<compile_context>
chip_gen: v7x
topology: tpu7x:2x2x1
jax: 0.10.0
libtpu: 0.0.40
codegen_flags: <defaults>
</compile_context>

<pallas_src>
import functools
import math

import jax
import jax.numpy as jnp
from jax.experimental import pallas as pl
from jax.experimental.pallas import tpu as pltpu


def _round_up(x, m):
    return ((x + m - 1) // m) * m


# ---------------------------------------------------------------------------
# Fused CayleyConv kernel: whole r/K Jacobi recursion on one activation block
# ---------------------------------------------------------------------------
def _cayley_conv_kernel(c0_ref, cjr_ref, cji_ref,
                        jr_ref, ji_ref, br_ref, bi_ref, x_ref,
                        out_ref, *, r, K):
    """One CayleyConv applied to one (Np, tf) column block of the features.

    c0/cjr/cji live in SMEM (scalar coefficients); jr/ji/br/bi are the full
    (Np, Np) graph operator planes in VMEM; x is the (Np, tf) activation
    block.  All intermediates stay on-chip; output written once.
    """
    jr = jr_ref[...]
    ji = ji_ref[...]
    js = jr + ji            # in-kernel VPU add (replaces the old asum stream)
    br = br_ref[...]
    bi = bi_ref[...]
    bs = br + bi

    def cmul(gr, gi, gs, ur, ui):
        # Gauss 3-multiplication complex matmul (graph matrix on the left):
        #   Re = gr@ur - gi@ui ;  Im = (gr+gi)@(ur+ui) - gr@ur - gi@ui
        t1 = jnp.dot(gr, ur, preferred_element_type=jnp.float32)
        t2 = jnp.dot(gi, ui, preferred_element_type=jnp.float32)
        t3 = jnp.dot(gs, ur + ui, preferred_element_type=jnp.float32)
        return t1 - t2, t3 - t1 - t2

    x = x_ref[...]
    out = c0_ref[0] * x
    yr = x
    yi = jnp.zeros_like(x)
    for j in range(r):                      # r, K are tiny static hyperparams
        bjr, bji = cmul(br, bi, bs, yr, yi)         # b_j = B @ y
        ykr, yki = bjr, bji
        for _ in range(K):                          # Jacobi steps
            pr, pi = cmul(jr, ji, js, ykr, yki)     # J @ y_k
            ykr = pr + bjr
            yki = pi + bji
        yr, yi = ykr, yki
        # out += 2 * Re(c_j * y)
        out = out + 2.0 * (cjr_ref[j] * yr - cji_ref[j] * yi)
    out_ref[...] = out.astype(out_ref.dtype)


# ---------------------------------------------------------------------------
# Graph operator construction (shared by the Pallas path and the reference)
# ---------------------------------------------------------------------------
def _build_graph_operators(lap, h, alpha):
    """Jacobi iteration matrix `jac` and RHS matrix `bmat` (both complex)."""
    n = lap.shape[0]
    eye = jnp.eye(n, dtype=jnp.float32)
    lm = lap - alpha * eye                       # l_weight[dia_index] -= alpha
    l_dia = jnp.diagonal(lm)
    tmp_left = 1.0 / (h * l_dia + 1j)            # 1/(h*L_ii + i); never inf
    off = lm * (1.0 - eye)                       # off-diagonal part of L
    # propagate(): out[tgt] += (-tmp_left[src] * h * L[src, tgt]) * y[src]
    jac = (-(tmp_left[:, None] * (h * off))).T
    # b (sparse coo (row, col)): B[r, c] = tmp_left[r] * (h*L[r, c] - i*delta)
    bmat = tmp_left[:, None] * (h * lm - 1j * eye)
    return jac, bmat


# ---------------------------------------------------------------------------
# CayleyConv (Jacobi variant) — Pallas fused kernel path
# ---------------------------------------------------------------------------
def cayley_conv_pallas(conv_p, x, lap, *, r, K, tile_f=128):
    n, f = x.shape
    jac, bmat = _build_graph_operators(lap, conv_p["h"], conv_p["alpha"])

    jr = jnp.real(jac).astype(jnp.float32)
    ji = jnp.imag(jac).astype(jnp.float32)
    br_ = jnp.real(bmat).astype(jnp.float32)
    bi_ = jnp.imag(bmat).astype(jnp.float32)

    # Lane-dense padding: node dim to a multiple of 8 (f32 sublane), feature
    # dim to whole 128-wide tiles.  Zero padding stays zero through the whole
    # recursion; sliced off afterwards.
    Np = _round_up(max(n, 8), 8)
    Fp = _round_up(max(f, 128), 128)
    tf = min(tile_f, Fp)
    Fp = _round_up(Fp, tf)

    def pad2(m, rows, cols):
        r0, c0 = m.shape
        return jnp.pad(m, ((0, rows - r0), (0, cols - c0)))

    jrp = pad2(jr, Np, Np)
    jip = pad2(ji, Np, Np)
    brp = pad2(br_, Np, Np)
    bip = pad2(bi_, Np, Np)
    xp = pad2(x.astype(jnp.float32), Np, Fp)

    c0_arr = jnp.reshape(conv_p["c_0"].astype(jnp.float32), (1,))
    cjr = jnp.real(conv_p["c_j"]).astype(jnp.float32)
    cji = jnp.imag(conv_p["c_j"]).astype(jnp.float32)

    grid = (Fp // tf,)
    smem_spec = pl.BlockSpec(memory_space=pltpu.MemorySpace.SMEM)
    g_spec = pl.BlockSpec((Np, Np), lambda fb: (0, 0))
    x_spec = pl.BlockSpec((Np, tf), lambda fb: (0, fb))

    out = pl.pallas_call(
        functools.partial(_cayley_conv_kernel, r=r, K=K),
        out_shape=jax.ShapeDtypeStruct((Np, Fp), jnp.float32),
        grid=grid,
        in_specs=[smem_spec, smem_spec, smem_spec,
                  g_spec, g_spec, g_spec, g_spec, x_spec],
        out_specs=x_spec,
        compiler_params=pltpu.CompilerParams(
            dimension_semantics=("parallel",)),
    )(c0_arr, cjr, cji, jrp, jip, brp, bip, xp)

    return out[:n, :f]


# ---------------------------------------------------------------------------
# CayleyConv — pure-JAX complex reference (for validation only)
# ---------------------------------------------------------------------------
def cayley_conv_ref(conv_p, x, lap, *, r, K):
    jac, bmat = _build_graph_operators(lap, conv_p["h"], conv_p["alpha"])
    c_0 = conv_p["c_0"]
    c_j = conv_p["c_j"]
    y = x.astype(jnp.complex64)
    out = c_0 * x
    for j in range(r):
        b_j = jnp.matmul(bmat, y, precision=jax.lax.Precision.HIGHEST)
        yk = b_j
        for _ in range(K):
            yk = jnp.matmul(jac, yk, precision=jax.lax.Precision.HIGHEST) + b_j
        y = yk
        out = out + 2.0 * jnp.real(c_j[j] * y)
    return out


# ---------------------------------------------------------------------------
# CayleyNet forward: convs + ReLU -> TopKPooling -> mean pool -> Linear
# ---------------------------------------------------------------------------
def cayleynet_forward(params, x, edge_index, batch, *, r, K, pool_ratio,
                      conv_fn):
    # TODO(synk): per-graph top-k / segment pooling for batched graphs; a
    # single-graph batch (batch == 0 everywhere) is assumed here.
    del batch
    n = x.shape[0]
    row, col = edge_index
    # get_laplacian(..., normalization=None): L = D - A with unit edge weights.
    adj = jnp.zeros((n, n), jnp.float32).at[row, col].add(1.0)
    deg = jnp.sum(adj, axis=1)
    lap = jnp.diag(deg) - adj

    for conv_p in params["convs"]:
        x = conv_fn(conv_p, x, lap, r=r, K=K)
        x = jax.nn.relu(x)

    # TopKPooling(hidden, ratio=0.9): score -> tanh -> top-k gate.
    w = params["pool_w"]
    score = jnp.tanh(jnp.dot(x, w) / jnp.linalg.norm(w))
    kk = int(math.ceil(pool_ratio * n))
    vals, perm = jax.lax.top_k(score, kk)
    x = x[perm] * vals[:, None]

    # global_mean_pool (single graph) -> (1, hidden).
    x = jnp.mean(x, axis=0, keepdims=True)

    # F.dropout(p=0.2) is identity in eval mode.
    # Final nn.Linear is a (1, hidden) @ (hidden, out) matvec — negligible
    # compute, so it is NOT routed through the Pallas kernel (perf review).
    return jnp.dot(x, params["lin_w"].T) + params["lin_b"]


def init_params(key, n_conv, r, hidden_dim, output_dim):
    convs = []
    for _ in range(n_conv):
        convs.append({
            "h": jnp.asarray(0.1, jnp.float32),
            "alpha": jnp.asarray(0.1, jnp.float32),
            "c_0": jnp.asarray(0.1, jnp.float32),
            "c_j": jnp.full((r,), 0.1 + 0.1j, dtype=jnp.complex64),
        })
    k_pool, k_w, k_b = jax.random.split(key, 3)
    bound = 1.0 / math.sqrt(hidden_dim)
    return {
        "convs": convs,
        "pool_w": jax.random.uniform(k_pool, (hidden_dim,), jnp.float32,
                                     -bound, bound),
        "lin_w": jax.random.uniform(k_w, (output_dim, hidden_dim), jnp.float32,
                                    -bound, bound),
        "lin_b": jax.random.uniform(k_b, (output_dim,), jnp.float32,
                                    -bound, bound),
    }


if __name__ == "__main__":
    key = jax.random.PRNGKey(0)
    k_x, k_p = jax.random.split(key, 2)

    # Model / graph hyperparameters (small, consistent with the module).
    n_nodes, feat_dim, hidden_dim, out_dim = 24, 32, 32, 8
    n_conv, r, k_hops, pool_ratio = 2, 2, 2, 0.9

    x = jax.random.normal(k_x, (n_nodes, feat_dim), jnp.float32)

    # Small deterministic undirected graph: 24-node ring plus 6 chords.
    idx = jnp.arange(n_nodes)
    ring_s, ring_d = idx, (idx + 1) % n_nodes
    ch = jnp.arange(0, 12, 2)
    ch_s, ch_d = ch, (ch + 7) % n_nodes
    src = jnp.concatenate([ring_s, ring_d, ch_s, ch_d])
    dst = jnp.concatenate([ring_d, ring_s, ch_d, ch_s])
    edge_index = jnp.stack([src, dst]).astype(jnp.int32)
    batch = jnp.zeros((n_nodes,), jnp.int32)

    params = init_params(k_p, n_conv, r, hidden_dim, out_dim)

    # --- unit check: fused Pallas CayleyConv vs complex-matmul reference ----
    adj = jnp.zeros((n_nodes, n_nodes), jnp.float32).at[src, dst].add(1.0)
    lap = jnp.diag(jnp.sum(adj, axis=1)) - adj
    conv_pallas = jax.jit(functools.partial(cayley_conv_pallas, r=r, K=k_hops))
    conv_ref = jax.jit(functools.partial(cayley_conv_ref, r=r, K=k_hops))
    y_conv = jax.block_until_ready(conv_pallas(params["convs"][0], x, lap))
    y_conv_ref = jax.block_until_ready(conv_ref(params["convs"][0], x, lap))
    assert y_conv.shape == (n_nodes, feat_dim)
    assert jnp.allclose(y_conv, y_conv_ref, atol=1e-3, rtol=1e-3)

    # --- full CayleyNet forward ---------------------------------------------
    fwd = jax.jit(functools.partial(cayleynet_forward, r=r, K=k_hops,
                                    pool_ratio=pool_ratio,
                                    conv_fn=cayley_conv_pallas))
    fwd_ref = jax.jit(functools.partial(cayleynet_forward, r=r, K=k_hops,
                                        pool_ratio=pool_ratio,
                                        conv_fn=cayley_conv_ref))

    y = jax.block_until_ready(fwd(params, x, edge_index, batch))
    y_ref = jax.block_until_ready(fwd_ref(params, x, edge_index, batch))

    assert y.shape == (1, out_dim)
    assert y.dtype == jnp.float32
    assert jnp.allclose(y, y_ref, atol=1e-3, rtol=1e-3)
    print("KERNEL_OK")
</pallas_src>

<mosaic_0001>
module attributes {stable_mosaic.version = 11 : i64} {
  func.func @_cayley_conv_kernel(%arg0: i32, %arg1: memref<1xf32, #tpu.memory_space<smem>>, %arg2: memref<2xf32, #tpu.memory_space<smem>>, %arg3: memref<2xf32, #tpu.memory_space<smem>>, %arg4: memref<24x24xf32, #tpu.memory_space<vmem>>, %arg5: memref<24x24xf32, #tpu.memory_space<vmem>>, %arg6: memref<24x24xf32, #tpu.memory_space<vmem>>, %arg7: memref<24x24xf32, #tpu.memory_space<vmem>>, %arg8: memref<24x128xf32, #tpu.memory_space<vmem>>, %arg9: memref<24x128xf32, #tpu.memory_space<vmem>>) attributes {dimension_semantics = [#tpu.dimension_semantics<parallel>], iteration_bounds = array<i64: 1>, scalar_prefetch = 0 : i64, scratch_operands = 0 : i64, tpu.core_type = #tpu.core_type<tc>, window_params = [{transform_indices = @transform_0, window_bounds = array<i64: 1>}, {transform_indices = @transform_1, window_bounds = array<i64: 2>}, {transform_indices = @transform_2, window_bounds = array<i64: 2>}, {pipeline_mode = #tpu.pipeline_mode<synchronous>, transform_indices = @transform_3, window_bounds = array<i64: 24, 24>}, {pipeline_mode = #tpu.pipeline_mode<synchronous>, transform_indices = @transform_4, window_bounds = array<i64: 24, 24>}, {pipeline_mode = #tpu.pipeline_mode<synchronous>, transform_indices = @transform_5, window_bounds = array<i64: 24, 24>}, {pipeline_mode = #tpu.pipeline_mode<synchronous>, transform_indices = @transform_6, window_bounds = array<i64: 24, 24>}, {transform_indices = @transform_7, window_bounds = array<i64: 24, 128>}, {transform_indices = @transform_8, window_bounds = array<i64: 24, 128>}]} {
    %c0 = arith.constant 0 : index
    %c0_0 = arith.constant 0 : index
    %0 = vector.load %arg4[%c0, %c0_0] : memref<24x24xf32, #tpu.memory_space<vmem>>, vector<24x24xf32>
    %c0_1 = arith.constant 0 : index
    %c0_2 = arith.constant 0 : index
    %1 = vector.load %arg5[%c0_1, %c0_2] : memref<24x24xf32, #tpu.memory_space<vmem>>, vector<24x24xf32>
    %2 = arith.addf %0, %1 : vector<24x24xf32>
    %c0_3 = arith.constant 0 : index
    %c0_4 = arith.constant 0 : index
    %3 = vector.load %arg6[%c0_3, %c0_4] : memref<24x24xf32, #tpu.memory_space<vmem>>, vector<24x24xf32>
    %c0_5 = arith.constant 0 : index
    %c0_6 = arith.constant 0 : index
    %4 = vector.load %arg7[%c0_5, %c0_6] : memref<24x24xf32, #tpu.memory_space<vmem>>, vector<24x24xf32>
    %5 = arith.addf %3, %4 : vector<24x24xf32>
    %c0_7 = arith.constant 0 : index
    %c0_8 = arith.constant 0 : index
    %6 = vector.load %arg8[%c0_7, %c0_8] : memref<24x128xf32, #tpu.memory_space<vmem>>, vector<24x128xf32>
    %c0_9 = arith.constant 0 : index
    %7 = memref.load %arg1[%c0_9] : memref<1xf32, #tpu.memory_space<smem>>
    %8 = vector.broadcast %7 : f32 to vector<24x128xf32>
    %9 = arith.mulf %8, %6 : vector<24x128xf32>
    %cst = arith.constant 0.000000e+00 : f32
    %10 = vector.broadcast %cst : f32 to vector<24x128xf32>
    %cst_10 = arith.constant dense<0.000000e+00> : vector<24x128xf32>
    %11 = tpu.matmul %3, %6, %cst_10 {dimension_numbers = #tpu.dot_dimension_numbers<[1], [0], [0], [1], [0, 0, 1, 1], [], []>} : vector<24x24xf32>, vector<24x128xf32>, vector<24x128xf32> -> vector<24x128xf32>
    %cst_11 = arith.constant dense<0.000000e+00> : vector<24x128xf32>
    %12 = tpu.matmul %4, %10, %cst_11 {dimension_numbers = #tpu.dot_dimension_numbers<[1], [0], [0], [1], [0, 0, 1, 1], [], []>} : vector<24x24xf32>, vector<24x128xf32>, vector<24x128xf32> -> vector<24x128xf32>
    %13 = arith.addf %6, %10 : vector<24x128xf32>
    %cst_12 = arith.constant dense<0.000000e+00> : vector<24x128xf32>
    %14 = tpu.matmul %5, %13, %cst_12 {dimension_numbers = #tpu.dot_dimension_numbers<[1], [0], [0], [1], [0, 0, 1, 1], [], []>} : vector<24x24xf32>, vector<24x128xf32>, vector<24x128xf32> -> vector<24x128xf32>
    %15 = arith.subf %11, %12 : vector<24x128xf32>
    %16 = arith.subf %14, %11 : vector<24x128xf32>
    %17 = arith.subf %16, %12 : vector<24x128xf32>
    %cst_13 = arith.constant dense<0.000000e+00> : vector<24x128xf32>
    %18 = tpu.matmul %0, %15, %cst_13 {dimension_numbers = #tpu.dot_dimension_numbers<[1], [0], [0], [1], [0, 0, 1, 1], [], []>} : vector<24x24xf32>, vector<24x128xf32>, vector<24x128xf32> -> vector<24x128xf32>
    %cst_14 = arith.constant dense<0.000000e+00> : vector<24x128xf32>
    %19 = tpu.matmul %1, %17, %cst_14 {dimension_numbers = #tpu.dot_dimension_numbers<[1], [0], [0], [1], [0, 0, 1, 1], [], []>} : vector<24x24xf32>, vector<24x128xf32>, vector<24x128xf32> -> vector<24x128xf32>
    %20 = arith.addf %15, %17 : vector<24x128xf32>
    %cst_15 = arith.constant dense<0.000000e+00> : vector<24x128xf32>
    %21 = tpu.matmul %2, %20, %cst_15 {dimension_numbers = #tpu.dot_dimension_numbers<[1], [0], [0], [1], [0, 0, 1, 1], [], []>} : vector<24x24xf32>, vector<24x128xf32>, vector<24x128xf32> -> vector<24x128xf32>
    %22 = arith.subf %18, %19 : vector<24x128xf32>
    %23 = arith.subf %21, %18 : vector<24x128xf32>
    %24 = arith.subf %23, %19 : vector<24x128xf32>
    %25 = arith.addf %22, %15 : vector<24x128xf32>
    %26 = arith.addf %24, %17 : vector<24x128xf32>
    %cst_16 = arith.constant dense<0.000000e+00> : vector<24x128xf32>
    %27 = tpu.matmul %0, %25, %cst_16 {dimension_numbers = #tpu.dot_dimension_numbers<[1], [0], [0], [1], [0, 0, 1, 1], [], []>} : vector<24x24xf32>, vector<24x128xf32>, vector<24x128xf32> -> vector<24x128xf32>
    %cst_17 = arith.constant dense<0.000000e+00> : vector<24x128xf32>
    %28 = tpu.matmul %1, %26, %cst_17 {dimension_numbers = #tpu.dot_dimension_numbers<[1], [0], [0], [1], [0, 0, 1, 1], [], []>} : vector<24x24xf32>, vector<24x128xf32>, vector<24x128xf32> -> vector<24x128xf32>
    %29 = arith.addf %25, %26 : vector<24x128xf32>
    %cst_18 = arith.constant dense<0.000000e+00> : vector<24x128xf32>
    %30 = tpu.matmul %2, %29, %cst_18 {dimension_numbers = #tpu.dot_dimension_numbers<[1], [0], [0], [1], [0, 0, 1, 1], [], []>} : vector<24x24xf32>, vector<24x128xf32>, vector<24x128xf32> -> vector<24x128xf32>
    %31 = arith.subf %27, %28 : vector<24x128xf32>
    %32 = arith.subf %30, %27 : vector<24x128xf32>
    %33 = arith.subf %32, %28 : vector<24x128xf32>
    %34 = arith.addf %31, %15 : vector<24x128xf32>
    %35 = arith.addf %33, %17 : vector<24x128xf32>
    %c0_19 = arith.constant 0 : index
    %36 = memref.load %arg2[%c0_19] : memref<2xf32, #tpu.memory_space<smem>>
    %37 = vector.broadcast %36 : f32 to vector<24x128xf32>
    %38 = arith.mulf %37, %34 : vector<24x128xf32>
    %c0_20 = arith.constant 0 : index
    %39 = memref.load %arg3[%c0_20] : memref<2xf32, #tpu.memory_space<smem>>
    %40 = vector.broadcast %39 : f32 to vector<24x128xf32>
    %41 = arith.mulf %40, %35 : vector<24x128xf32>
    %42 = arith.subf %38, %41 : vector<24x128xf32>
    %cst_21 = arith.constant 2.000000e+00 : f32
    %43 = vector.broadcast %cst_21 : f32 to vector<24x128xf32>
    %44 = arith.mulf %43, %42 : vector<24x128xf32>
    %45 = arith.addf %9, %44 : vector<24x128xf32>
    %cst_22 = arith.constant dense<0.000000e+00> : vector<24x128xf32>
    %46 = tpu.matmul %3, %34, %cst_22 {dimension_numbers = #tpu.dot_dimension_numbers<[1], [0], [0], [1], [0, 0, 1, 1], [], []>} : vector<24x24xf32>, vector<24x128xf32>, vector<24x128xf32> -> vector<24x128xf32>
    %cst_23 = arith.constant dense<0.000000e+00> : vector<24x128xf32>
    %47 = tpu.matmul %4, %35, %cst_23 {dimension_numbers = #tpu.dot_dimension_numbers<[1], [0], [0], [1], [0, 0, 1, 1], [], []>} : vector<24x24xf32>, vector<24x128xf32>, vector<24x128xf32> -> vector<24x128xf32>
    %48 = arith.addf %34, %35 : vector<24x128xf32>
    %cst_24 = arith.constant dense<0.000000e+00> : vector<24x128xf32>
    %49 = tpu.matmul %5, %48, %cst_24 {dimension_numbers = #tpu.dot_dimension_numbers<[1], [0], [0], [1], [0, 0, 1, 1], [], []>} : vector<24x24xf32>, vector<24x128xf32>, vector<24x128xf32> -> vector<24x128xf32>
    %50 = arith.subf %46, %47 : vector<24x128xf32>
    %51 = arith.subf %49, %46 : vector<24x128xf32>
    %52 = arith.subf %51, %47 : vector<24x128xf32>
    %cst_25 = arith.constant dense<0.000000e+00> : vector<24x128xf32>
    %53 = tpu.matmul %0, %50, %cst_25 {dimension_numbers = #tpu.dot_dimension_numbers<[1], [0], [0], [1], [0, 0, 1, 1], [], []>} : vector<24x24xf32>, vector<24x128xf32>, vector<24x128xf32> -> vector<24x128xf32>
    %cst_26 = arith.constant dense<0.000000e+00> : vector<24x128xf32>
    %54 = tpu.matmul %1, %52, %cst_26 {dimension_numbers = #tpu.dot_dimension_numbers<[1], [0], [0], [1], [0, 0, 1, 1], [], []>} : vector<24x24xf32>, vector<24x128xf32>, vector<24x128xf32> -> vector<24x128xf32>
    %55 = arith.addf %50, %52 : vector<24x128xf32>
    %cst_27 = arith.constant dense<0.000000e+00> : vector<24x128xf32>
    %56 = tpu.matmul %2, %55, %cst_27 {dimension_numbers = #tpu.dot_dimension_numbers<[1], [0], [0], [1], [0, 0, 1, 1], [], []>} : vector<24x24xf32>, vector<24x128xf32>, vector<24x128xf32> -> vector<24x128xf32>
    %57 = arith.subf %53, %54 : vector<24x128xf32>
    %58 = arith.subf %56, %53 : vector<24x128xf32>
    %59 = arith.subf %58, %54 : vector<24x128xf32>
    %60 = arith.addf %57, %50 : vector<24x128xf32>
    %61 = arith.addf %59, %52 : vector<24x128xf32>
    %cst_28 = arith.constant dense<0.000000e+00> : vector<24x128xf32>
    %62 = tpu.matmul %0, %60, %cst_28 {dimension_numbers = #tpu.dot_dimension_numbers<[1], [0], [0], [1], [0, 0, 1, 1], [], []>} : vector<24x24xf32>, vector<24x128xf32>, vector<24x128xf32> -> vector<24x128xf32>
    %cst_29 = arith.constant dense<0.000000e+00> : vector<24x128xf32>
    %63 = tpu.matmul %1, %61, %cst_29 {dimension_numbers = #tpu.dot_dimension_numbers<[1], [0], [0], [1], [0, 0, 1, 1], [], []>} : vector<24x24xf32>, vector<24x128xf32>, vector<24x128xf32> -> vector<24x128xf32>
    %64 = arith.addf %60, %61 : vector<24x128xf32>
    %cst_30 = arith.constant dense<0.000000e+00> : vector<24x128xf32>
    %65 = tpu.matmul %2, %64, %cst_30 {dimension_numbers = #tpu.dot_dimension_numbers<[1], [0], [0], [1], [0, 0, 1, 1], [], []>} : vector<24x24xf32>, vector<24x128xf32>, vector<24x128xf32> -> vector<24x128xf32>
    %66 = arith.subf %62, %63 : vector<24x128xf32>
    %67 = arith.subf %65, %62 : vector<24x128xf32>
    %68 = arith.subf %67, %63 : vector<24x128xf32>
    %69 = arith.addf %66, %50 : vector<24x128xf32>
    %70 = arith.addf %68, %52 : vector<24x128xf32>
    %c1 = arith.constant 1 : index
    %71 = memref.load %arg2[%c1] : memref<2xf32, #tpu.memory_space<smem>>
    %72 = vector.broadcast %71 : f32 to vector<24x128xf32>
    %73 = arith.mulf %72, %69 : vector<24x128xf32>
    %c1_31 = arith.constant 1 : index
    %74 = memref.load %arg3[%c1_31] : memref<2xf32, #tpu.memory_space<smem>>
    %75 = vector.broadcast %74 : f32 to vector<24x128xf32>
    %76 = arith.mulf %75, %70 : vector<24x128xf32>
    %77 = arith.subf %73, %76 : vector<24x128xf32>
    %cst_32 = arith.constant 2.000000e+00 : f32
    %78 = vector.broadcast %cst_32 : f32 to vector<24x128xf32>
    %79 = arith.mulf %78, %77 : vector<24x128xf32>
    %80 = arith.addf %45, %79 : vector<24x128xf32>
    %c0_33 = arith.constant 0 : index
    %c0_34 = arith.constant 0 : index
    %81 = vector.load %arg9[%c0_33, %c0_34] : memref<24x128xf32, #tpu.memory_space<vmem>>, vector<24x128xf32>
    tpu.vector_store %arg9[%c0_33, %c0_34], %80 {strides = array<i32>} : memref<24x128xf32, #tpu.memory_space<vmem>>, vector<24x128xf32>,
    return
  }
  func.func @transform_0(%arg0: i32) -> i32 {
    %c0_i32 = arith.constant 0 : i32
    %c0_i32_0 = arith.constant 0 : i32
    return %c0_i32 : i32
  }
  func.func @transform_1(%arg0: i32) -> i32 {
    %c0_i32 = arith.constant 0 : i32
    %c0_i32_0 = arith.constant 0 : i32
    return %c0_i32 : i32
  }
  func.func @transform_2(%arg0: i32) -> i32 {
    %c0_i32 = arith.constant 0 : i32
    %c0_i32_0 = arith.constant 0 : i32
    return %c0_i32 : i32
  }
  func.func @transform_3(%arg0: i32) -> (i32, i32) {
    %c0_i32 = arith.constant 0 : i32
    %c0_i32_0 = arith.constant 0 : i32
    %c0_i32_1 = arith.constant 0 : i32
    return %c0_i32, %c0_i32_0 : i32, i32
  }
  func.func @transform_4(%arg0: i32) -> (i32, i32) {
    %c0_i32 = arith.constant 0 : i32
    %c0_i32_0 = arith.constant 0 : i32
    %c0_i32_1 = arith.constant 0 : i32
    return %c0_i32, %c0_i32_0 : i32, i32
  }
  func.func @transform_5(%arg0: i32) -> (i32, i32) {
    %c0_i32 = arith.constant 0 : i32
    %c0_i32_0 = arith.constant 0 : i32
    %c0_i32_1 = arith.constant 0 : i32
    return %c0_i32, %c0_i32_0 : i32, i32
  }
  func.func @transform_6(%arg0: i32) -> (i32, i32) {
    %c0_i32 = arith.constant 0 : i32
    %c0_i32_0 = arith.constant 0 : i32
    %c0_i32_1 = arith.constant 0 : i32
    return %c0_i32, %c0_i32_0 : i32, i32
  }
  func.func @transform_7(%arg0: i32) -> (i32, i32) {
    %c0_i32 = arith.constant 0 : i32
    %c0_i32_0 = arith.constant 0 : i32
    return %c0_i32, %arg0 : i32, i32
  }
  func.func @transform_8(%arg0: i32) -> (i32, i32) {
    %c0_i32 = arith.constant 0 : i32
    %c0_i32_0 = arith.constant 0 : i32
    return %c0_i32, %arg0 : i32, i32
  }
}

</mosaic_0001>

<llo_original>
// kernel: custom-call.1
$region0: #{custom-call.1}
  %s0 = inlined_call_operand.hbm [shape: c64[2], index: 0, kind: input, shape index: {}]
  %s1 = inlined_call_operand.vmem [shape: f32[2], index: 1, kind: output, shape index: {}]
  %s2 = scalar_lea.hbm %s0, 16
  $region1: #{custom-call.1} parent=0
    #allocation0 [shape = 's32[1]{0}', space=sflag, size = 0x4, scoped, tag = 'scoped memory for custom-call.1']
    %3 = vsyncpa [#allocation0], 0
    %s4 = sshll.u32 %s1, 4
    %s5 = int_to_ptr.vmem [resolvable:$true] %s4
    %7 = dma.hbm_to_vmem [thread:$0]  %s2, 16, %s5, [#allocation0]
    %8 = dma.done [#allocation0], 16
    %9 = vsyncpa [#allocation0], 1

// kernel: custom-call
$region0: #{custom-call}
  %s0 = inlined_call_operand.hbm [shape: c64[2], index: 0, kind: input, shape index: {}]
  %s1 = inlined_call_operand.vmem [shape: f32[2], index: 1, kind: output, shape index: {}]
  $region1: #{custom-call} parent=0
    #allocation0 [shape = 's32[1]{0}', space=sflag, size = 0x4, scoped, tag = 'scoped memory for custom-call']
    %2 = vsyncpa [#allocation0], 0
    %s3 = sshll.u32 %s1, 4
    %s4 = int_to_ptr.vmem [resolvable:$true] %s3
    %6 = dma.hbm_to_vmem [thread:$0]  %s0, 16, %s4, [#allocation0]
    %7 = dma.done [#allocation0], 16
    %8 = vsyncpa [#allocation0], 1

// kernel: cayley_conv_pallas.1
$region0: #{cayley_conv_pallas.1}
  #allocation0 [shape = 'u32[]', space=smem, size = 0x4, offset = 0x4, fixed_abs, tag = 'smem constant byte address 0x4 - core index']
  #allocation1 [shape = 'u32[144,128]{1,0:T(1,128)}', space=vmem, size = 0x12000, scoped, tag = 'internal scratch']
  #allocation2 [shape = 'f32[1]{0:T(128)S(6)}', space=smem, size = 0x200, scoped, tag = 'scoped memory for cayley_conv_pallas.1']
  %s0 = inlined_call_operand.<no memory space> [shape: f32[1], index: 0, kind: input, shape index: {}]
  %s1 = inlined_call_operand.vmem [shape: f32[2], index: 1, kind: input, shape index: {}]
  %s2 = inlined_call_operand.vmem [shape: f32[2], index: 2, kind: input, shape index: {}]
  %s3 = inlined_call_operand.vmem [shape: f32[24,24], index: 3, kind: input, shape index: {}]
  %s4 = inlined_call_operand.vmem [shape: f32[24,24], index: 4, kind: input, shape index: {}]
  %s5 = inlined_call_operand.vmem [shape: f32[24,24], index: 5, kind: input, shape index: {}]
  %s6 = inlined_call_operand.vmem [shape: f32[24,24], index: 6, kind: input, shape index: {}]
  %s7 = inlined_call_operand.vmem [shape: f32[24,128], index: 7, kind: input, shape index: {}]
  %s8 = inlined_call_operand.hbm [shape: f32[24,128], index: 8, kind: output, shape index: {}]
  %s9 = sld [smem:[#allocation0]]
  $region50: #{cayley_conv_pallas.1} parent=0
    _
  %s11 = ssub.s32 1, %s9
  %s12 = scalar_select 0, %s11, %s9
  %13 = sst [smem:[#allocation2]] %s0
  $region1: #{cayley_conv_pallas.1} parent=0
    #allocation3 [shape = 'u8[512]{0}', space=smem, size = 0x200, scoped, tag = 'input window, operand 1, single buffered']
    #allocation4 [shape = 's32[1]{0}', space=sflag, size = 0x4, scoped, tag = 'scoped memory for cayley_conv_pallas.1']
    #allocation5 [shape = 's32[1]{0}', space=sflag, size = 0x4, scoped, tag = 'scoped memory for cayley_conv_pallas.1']
    #allocation6 [shape = 'u8[512]{0}', space=smem, size = 0x200, scoped, tag = 'input window, operand 2, single buffered']
    #allocation7 [shape = 's32[1]{0}', space=sflag, size = 0x4, scoped, tag = 'scoped memory for cayley_conv_pallas.1']
    #allocation8 [shape = 'u8[12288]{0}', space=vmem, size = 0x3000, scoped, tag = 'output window, operand 0, single buffered']
    %14 = vsyncpa [#allocation5], 0
    %15 = vsyncpa [#allocation7], 0
    %16 = vsyncpa [#allocation4], 0
    // Predicated region
    $region2: #{cayley_conv_pallas.1} parent=1 // pred_check
      _
    $region3: #{cayley_conv_pallas.1} parent=1 // pred_check_branch
      %18 = sbr.rel (0) target = $region5
    $region4: #{cayley_conv_pallas.1} parent=1 // pred_region
      _
    $region5: #{cayley_conv_pallas.1} parent=1 // pred_fallthru
      _
    // Predicated region
    $region6: #{cayley_conv_pallas.1} parent=1 // pred_check
      _
    $region7: #{cayley_conv_pallas.1} parent=1 // pred_check_branch
      %20 = sbr.rel (0) target = $region9
    $region8: #{cayley_conv_pallas.1} parent=1 // pred_region
      %s22 = ssub.s32 16, 16
      %23 = vsyncadd [#allocation5], %s22
      %s25 = sshll.u32 %s1, 4
      %s26 = int_to_ptr.vmem [resolvable:$true] %s25
      %28 = dma.vmem_to_smem %s26, 16, [#allocation3], [#allocation5]
    $region9: #{cayley_conv_pallas.1} parent=1 // pred_fallthru
      _
    // Predicated region
    $region10: #{cayley_conv_pallas.1} parent=1 // pred_check
      _
    $region11: #{cayley_conv_pallas.1} parent=1 // pred_check_branch
      %30 = sbr.rel (0) target = $region13
    $region12: #{cayley_conv_pallas.1} parent=1 // pred_region
      %s32 = ssub.s32 16, 16
      %33 = vsyncadd [#allocation7], %s32
      %s35 = sshll.u32 %s2, 4
      %s36 = int_to_ptr.vmem [resolvable:$true] %s35
      %38 = dma.vmem_to_smem %s36, 16, [#allocation6], [#allocation7]
    $region13: #{cayley_conv_pallas.1} parent=1 // pred_fallthru
      _
    // Predicated region
    $region14: #{cayley_conv_pallas.1} parent=1 // pred_check
      _
    $region15: #{cayley_conv_pallas.1} parent=1 // pred_check_branch
      %40 = sbr.rel (0) target = $region17
    $region16: #{cayley_conv_pallas.1} parent=1 // pred_region
      _
    $region17: #{cayley_conv_pallas.1} parent=1 // pred_fallthru
      _
    // Predicated region
    $region18: #{cayley_conv_pallas.1} parent=1 // pred_check
      _
    $region19: #{cayley_conv_pallas.1} parent=1 // pred_check_branch
      %42 = sbr.rel (0) target = $region21
    $region20: #{cayley_conv_pallas.1} parent=1 // pred_region
      _
    $region21: #{cayley_conv_pallas.1} parent=1 // pred_fallthru
      _
    // Predicated region
    $region22: #{cayley_conv_pallas.1} parent=1 // pred_check
      _
    $region23: #{cayley_conv_pallas.1} parent=1 // pred_check_branch
      %44 = sbr.rel (0) target = $region25
    $region24: #{cayley_conv_pallas.1} parent=1 // pred_region
      _
    $region25: #{cayley_conv_pallas.1} parent=1 // pred_fallthru
      _
    // Predicated region
    $region26: #{cayley_conv_pallas.1} parent=1 // pred_check
      _
    $region27: #{cayley_conv_pallas.1} parent=1 // pred_check_branch
      %46 = sbr.rel (0) target = $region29
    $region28: #{cayley_conv_pallas.1} parent=1 // pred_region
      _
    $region29: #{cayley_conv_pallas.1} parent=1 // pred_fallthru
      _
    // Predicated region
    $region30: #{cayley_conv_pallas.1} parent=1 // pred_check
      _
    $region31: #{cayley_conv_pallas.1} parent=1 // pred_check_branch
      %48 = sbr.rel (0) target = $region33
    $region32: #{cayley_conv_pallas.1} parent=1 // pred_region
      _
    $region33: #{cayley_conv_pallas.1} parent=1 // pred_fallthru
      _
    // Predicated region
    $region34: #{cayley_conv_pallas.1} parent=1 // pred_check
      _
    $region35: #{cayley_conv_pallas.1} parent=1 // pred_check_branch
      %50 = sbr.rel (0) target = $region37
    $region36: #{cayley_conv_pallas.1} parent=1 // pred_region
      %51 = dma.done [#allocation5], 16
    $region37: #{cayley_conv_pallas.1} parent=1 // pred_fallthru
      _
    // Predicated region
    $region38: #{cayley_conv_pallas.1} parent=1 // pred_check
      _
    $region39: #{cayley_conv_pallas.1} parent=1 // pred_check_branch
      %53 = sbr.rel (0) target = $region41
    $region40: #{cayley_conv_pallas.1} parent=1 // pred_region
      %54 = dma.done [#allocation7], 16
    $region41: #{cayley_conv_pallas.1} parent=1 // pred_fallthru
      _
    %55 = sfence
    %v56 = vld [vmem:[%s3] sm:$0xff]
    %v57 = vld [vmem:[%s3 + $0x8] sm:$0xff]
    %v58 = vld [vmem:[%s3 + $0x10] sm:$0xff]
    %v59 = vld [vmem:[%s4] sm:$0xff]
    %v60 = vld [vmem:[%s4 + $0x8] sm:$0xff]
    %v61 = vld [vmem:[%s4 + $0x10] sm:$0xff]
    %v62 = vadd.f32 %v56, %v59
    %v63 = vadd.f32 %v57, %v60
    %v64 = vadd.f32 %v58, %v61
    %v65 = vld [vmem:[%s5] sm:$0xff]
    %v66 = vld [vmem:[%s5 + $0x8] sm:$0xff]
    %v67 = vld [vmem:[%s5 + $0x10] sm:$0xff]
    %v68 = vld [vmem:[%s6] sm:$0xff]
    %v69 = vld [vmem:[%s6 + $0x8] sm:$0xff]
    %v70 = vld [vmem:[%s6 + $0x10] sm:$0xff]
    %v71 = vadd.f32 %v65, %v68
    %v72 = vadd.f32 %v66, %v69
    %v73 = vadd.f32 %v67, %v70
    %v74 = vld [vmem:[%s7] sm:$0xff]
    %v75 = vld [vmem:[%s7 + $0x8] sm:$0xff]
    %v76 = vld [vmem:[%s7 + $0x10] sm:$0xff]
    %s77 = sld [smem:[#allocation2]]
    %v78 = vstv %s77
    %v79 = vmul.f32 %v78, %v74
    %v80 = vmul.f32 %v78, %v75
    %v81 = vmul.f32 %v78, %v76
    %vm82 = vcmask 195584
    %v84 = vsel %vm82, %v65, 0
    %v87 = vsel %vm82, %v66, 0
    %v90 = vsel %vm82, %v67, 0
    %92 = vmatprep.subr.mxu0 0.0
    %93 = vmatpush1.msra.mxu0 %v74
    %94 = vmatprep.subr.mxu0 0.0
    %95 = vmatpush1.msra.mxu0 %v75
    %96 = vmatprep.subr.mxu0 0.0
    %97 = vmatpush1.msra.mxu0 %v76
    %98 = vmatprep.subr.mxu0 0.0
    %99 = vmatpush1.msra.mxu0 0.0
    %100 = vmatprep.subr.mxu0 0.0
    %101 = vmatpush1.msra.mxu0 0.0
    %102 = vmatprep.subr.mxu0 0.0
    %103 = vmatpush1.msra.mxu0 0.0
    %104 = vmatprep.subr.mxu0 0.0
    %105 = vmatpush1.msra.mxu0 0.0
    %106 = vmatprep.subr.mxu0 0.0
    %107 = vmatpush1.msra.mxu0 0.0
    %108 = vmatprep.subr.mxu0 0.0
    %109 = vmatpush1.msra.mxu0 0.0
    %110 = vmatprep.subr.mxu0 0.0
    %111 = vmatpush1.msra.mxu0 0.0
    %112 = vmatprep.subr.mxu0 0.0
    %113 = vmatpush1.msra.mxu0 0.0
    %114 = vmatprep.subr.mxu0 0.0
    %115 = vmatpush1.msra.mxu0 0.0
    %116 = vmatprep.subr.mxu0 0.0
    %117 = vmatpush1.msra.mxu0 0.0
    %118 = vmatprep.subr.mxu0 0.0
    %119 = vmatpush1.msra.mxu0 0.0
    %120 = vmatprep.subr.mxu0 0.0
    %121 = vmatpush1.msra.mxu0 0.0
    %122 = vmatprep.subr.mxu0 0.0
    %123 = vmatpush1.msra.mxu0 0.0
    %124 = vmatprep.subr.mxu0 0.0
    %125 = vmatpush1.msra.mxu0 0.0
    %126 = vmatprep.subr.mxu0 0.0
    %127 = vmatpush1.msra.mxu0 0.0
    %128 = vmatprep.subr.mxu0 0.0
    %129 = vmatpush1.msra.mxu0 0.0
    %130 = vmatprep.subr.mxu0 0.0
    %131 = vmatpush1.msra.mxu0 0.0
    %132 = vmatprep.subr.mxu0 0.0
    %133 = vmatpush1.msra.mxu0 0.0
    %134 = vmatprep.subr.mxu0 0.0
    %135 = vmatpush1.msra.mxu0 0.0
    %136 = vmatprep.subr.mxu0 0.0
    %137 = vmatpush1.msra.mxu0 0.0
    %138 = vmatprep.subr.mxu0 0.0
    %139 = vmatpush1.msra.mxu0 0.0
    %140 = vmatprep.subr.mxu0 0.0
    %141 = vmatpush1.msra.mxu0 0.0
    %142 = vmatprep.subr.mxu0 0.0
    %143 = vmatpush1.msra.mxu0 0.0
    %144 = vmatprep.subr.mxu0 0.0
    %145 = vmatpush1.msra.mxu0 0.0
    %146 = vmatprep.subr.mxu0 0.0
    %147 = vmatpush1.msra.mxu0 0.0
    %148 = vmatprep.subr.mxu0 0.0
    %149 = vmatpush1.msra.mxu0 0.0
    %150 = vmatprep.subr.mxu0 0.0
    %151 = vmatpush1.msra.mxu0 0.0
    %152 = vmatprep.subr.mxu0 0.0
    %153 = vmatpush1.msra.mxu0 0.0
    %154 = vmatprep.subr.mxu0 0.0
    %155 = vmatpush1.msra.mxu0 0.0
    %156 = vmatprep.mubr.f32.mxu0 0.0
    %157 = vmatmul.mubr.f32.gmra.mrb[0].mxu0 %v84
    %v158 = vpop.f32.mrb[0].mxu0
    %v159 = vadd.f32 0.0, %v158
    %v160 = vpop.f32.mrb[0].mxu0
    %161 = vmatprep.mubr.f32.mxu0 0.0
    %162 = vmatmul.mubr.f32.gmra.mrb[0].mxu0 %v87
    %v163 = vpop.f32.mrb[0].mxu0
    %v164 = vadd.f32 0.0, %v163
    %v165 = vpop.f32.mrb[0].mxu0
    %166 = vmatprep.mubr.f32.mxu0 0.0
    %167 = vmatmul.mubr.f32.gmra.mrb[0].mxu0 %v90
    %v168 = vpop.f32.mrb[0].mxu0
    %v169 = vadd.f32 0.0, %v168
    %v170 = vpop.f32.mrb[0].mxu0
    %171 = vdwg.mxu0
    %v173 = vsel %vm82, %v68, 0
    %v176 = vsel %vm82, %v69, 0
    %v179 = vsel %vm82, %v70, 0
    %181 = vmatprep.subr.mxu0 0.0
    %182 = vmatpush1.msra.mxu0 0.0
    %183 = vmatprep.subr.mxu0 0.0
    %184 = vmatpush1.msra.mxu0 0.0
    %185 = vmatprep.subr.mxu0 0.0
    %186 = vmatpush1.msra.mxu0 0.0
    %187 = vmatprep.subr.mxu0 0.0
    %188 = vmatpush1.msra.mxu0 0.0
    %189 = vmatprep.subr.mxu0 0.0
    %190 = vmatpush1.msra.mxu0 0.0
    %191 = vmatprep.subr.mxu0 0.0
    %192 = vmatpush1.msra.mxu0 0.0
    %193 = vmatprep.subr.mxu0 0.0
    %194 = vmatpush1.msra.mxu0 0.0
    %195 = vmatprep.subr.mxu0 0.0
    %196 = vmatpush1.msra.mxu0 0.0
    %197 = vmatprep.subr.mxu0 0.0
    %198 = vmatpush1.msra.mxu0 0.0
    %199 = vmatprep.subr.mxu0 0.0
    %200 = vmatpush1.msra.mxu0 0.0
    %201 = vmatprep.subr.mxu0 0.0
    %202 = vmatpush1.msra.mxu0 0.0
    %203 = vmatprep.subr.mxu0 0.0
    %204 = vmatpush1.msra.mxu0 0.0
    %205 = vmatprep.subr.mxu0 0.0
    %206 = vmatpush1.msra.mxu0 0.0
    %207 = vmatprep.subr.mxu0 0.0
    %208 = vmatpush1.msra.mxu0 0.0
    %209 = vmatprep.subr.mxu0 0.0
    %210 = vmatpush1.msra.mxu0 0.0
    %211 = vmatprep.subr.mxu0 0.0
    %212 = vmatpush1.msra.mxu0 0.0
    %213 = vmatprep.subr.mxu0 0.0
    %214 = vmatpush1.msra.mxu0 0.0
    %215 = vmatprep.subr.mxu0 0.0
    %216 = vmatpush1.msra.mxu0 0.0
    %217 = vmatprep.subr.mxu0 0.0
    %218 = vmatpush1.msra.mxu0 0.0
    %219 = vmatprep.subr.mxu0 0.0
    %220 = vmatpush1.msra.mxu0 0.0
    %221 = vmatprep.subr.mxu0 0.0
    %222 = vmatpush1.msra.mxu0 0.0
    %223 = vmatprep.subr.mxu0 0.0
    %224 = vmatpush1.msra.mxu0 0.0
    %225 = vmatprep.subr.mxu0 0.0
    %226 = vmatpush1.msra.mxu0 0.0
    %227 = vmatprep.subr.mxu0 0.0
    %228 = vmatpush1.msra.mxu0 0.0
    %229 = vmatprep.subr.mxu0 0.0
    %230 = vmatpush1.msra.mxu0 0.0
    %231 = vmatprep.subr.mxu0 0.0
    %232 = vmatpush1.msra.mxu0 0.0
    %233 = vmatprep.subr.mxu0 0.0
    %234 = vmatpush1.msra.mxu0 0.0
    %235 = vmatprep.subr.mxu0 0.0
    %236 = vmatpush1.msra.mxu0 0.0
    %237 = vmatprep.subr.mxu0 0.0
    %238 = vmatpush1.msra.mxu0 0.0
    %239 = vmatprep.subr.mxu0 0.0
    %240 = vmatpush1.msra.mxu0 0.0
    %241 = vmatprep.subr.mxu0 0.0
    %242 = vmatpush1.msra.mxu0 0.0
    %243 = vmatprep.subr.mxu0 0.0
    %244 = vmatpush1.msra.mxu0 0.0
    %245 = vmatprep.mubr.f32.mxu0 0.0
    %246 = vmatmul.mubr.f32.gmra.mrb[0].mxu0 %v173
    %v247 = vpop.f32.mrb[0].mxu0
    %v248 = vadd.f32 0.0, %v247
    %v249 = vpop.f32.mrb[0].mxu0
    %250 = vmatprep.mubr.f32.mxu0 0.0
    %251 = vmatmul.mubr.f32.gmra.mrb[0].mxu0 %v176
    %v252 = vpop.f32.mrb[0].mxu0
    %v253 = vadd.f32 0.0, %v252
    %v254 = vpop.f32.mrb[0].mxu0
    %255 = vmatprep.mubr.f32.mxu0 0.0
    %256 = vmatmul.mubr.f32.gmra.mrb[0].mxu0 %v179
    %v257 = vpop.f32.mrb[0].mxu0
    %v258 = vadd.f32 0.0, %v257
    %v259 = vpop.f32.mrb[0].mxu0
    %260 = vdwg.mxu0
    %v261 = vadd.f32 %v74, 0.0
    %v262 = vadd.f32 %v75, 0.0
    %v263 = vadd.f32 %v76, 0.0
    %v265 = vsel %vm82, %v71, 0
    %v268 = vsel %vm82, %v72, 0
    %v271 = vsel %vm82, %v73, 0
    %273 = vmatprep.subr.mxu0 0.0
    %274 = vmatpush1.msra.mxu0 %v261
    %275 = vmatprep.subr.mxu0 0.0
    %276 = vmatpush1.msra.mxu0 %v262
    %277 = vmatprep.subr.mxu0 0.0
    %278 = vmatpush1.msra.mxu0 %v263
    %279 = vmatprep.subr.mxu0 0.0
    %280 = vmatpush1.msra.mxu0 0.0
    %281 = vmatprep.subr.mxu0 0.0
    %282 = vmatpush1.msra.mxu0 0.0
    %283 = vmatprep.subr.mxu0 0.0
    %284 = vmatpush1.msra.mxu0 0.0
    %285 = vmatprep.subr.mxu0 0.0
    %286 = vmatpush1.msra.mxu0 0.0
    %287 = vmatprep.subr.mxu0 0.0
    %288 = vmatpush1.msra.mxu0 0.0
    %289 = vmatprep.subr.mxu0 0.0
    %290 = vmatpush1.msra.mxu0 0.0
    %291 = vmatprep.subr.mxu0 0.0
    %292 = vmatpush1.msra.mxu0 0.0
    %293 = vmatprep.subr.mxu0 0.0
    %294 = vmatpush1.msra.mxu0 0.0
    %295 = vmatprep.subr.mxu0 0.0
    %296 = vmatpush1.msra.mxu0 0.0
    %297 = vmatprep.subr.mxu0 0.0
    %298 = vmatpush1.msra.mxu0 0.0
    %299 = vmatprep.subr.mxu0 0.0
    %300 = vmatpush1.msra.mxu0 0.0
    %301 = vmatprep.subr.mxu0 0.0
    %302 = vmatpush1.msra.mxu0 0.0
    %303 = vmatprep.subr.mxu0 0.0
    %304 = vmatpush1.msra.mxu0 0.0
    %305 = vmatprep.subr.mxu0 0.0
    %306 = vmatpush1.msra.mxu0 0.0
    %307 = vmatprep.subr.mxu0 0.0
    %308 = vmatpush1.msra.mxu0 0.0
    %309 = vmatprep.subr.mxu0 0.0
    %310 = vmatpush1.msra.mxu0 0.0
    %311 = vmatprep.subr.mxu0 0.0
    %312 = vmatpush1.msra.mxu0 0.0
    %313 = vmatprep.subr.mxu0 0.0
    %314 = vmatpush1.msra.mxu0 0.0
    %315 = vmatprep.subr.mxu0 0.0
    %316 = vmatpush1.msra.mxu0 0.0
    %317 = vmatprep.subr.mxu0 0.0
    %318 = vmatpush1.msra.mxu0 0.0
    %319 = vmatprep.subr.mxu0 0.0
    %320 = vmatpush1.msra.mxu0 0.0
    %321 = vmatprep.subr.mxu0 0.0
    %322 = vmatpush1.msra.mxu0 0.0
    %323 = vmatprep.subr.mxu0 0.0
    %324 = vmatpush1.msra.mxu0 0.0
    %325 = vmatprep.subr.mxu0 0.0
    %326 = vmatpush1.msra.mxu0 0.0
    %327 = vmatprep.subr.mxu0 0.0
    %328 = vmatpush1.msra.mxu0 0.0
    %329 = vmatprep.subr.mxu0 0.0
    %330 = vmatpush1.msra.mxu0 0.0
    %331 = vmatprep.subr.mxu0 0.0
    %332 = vmatpush1.msra.mxu0 0.0
    %333 = vmatprep.subr.mxu0 0.0
    %334 = vmatpush1.msra.mxu0 0.0
    %335 = vmatprep.subr.mxu0 0.0
    %336 = vmatpush1.msra.mxu0 0.0
    %337 = vmatprep.mubr.f32.mxu0 0.0
    %338 = vmatmul.mubr.f32.gmra.mrb[0].mxu0 %v265
    %v339 = vpop.f32.mrb[0].mxu0
    %v340 = vadd.f32 0.0, %v339
    %v341 = vpop.f32.mrb[0].mxu0
    %342 = vmatprep.mubr.f32.mxu0 0.0
    %343 = vmatmul.mubr.f32.gmra.mrb[0].mxu0 %v268
    %v344 = vpop.f32.mrb[0].mxu0
    %v345 = vadd.f32 0.0, %v344
    %v346 = vpop.f32.mrb[0].mxu0
    %347 = vmatprep.mubr.f32.mxu0 0.0
    %348 = vmatmul.mubr.f32.gmra.mrb[0].mxu0 %v271
    %v349 = vpop.f32.mrb[0].mxu0
    %v350 = vadd.f32 0.0, %v349
    %v351 = vpop.f32.mrb[0].mxu0
    %352 = vdwg.mxu0
    %v353 = vsub.f32 %v159, %v248
    %v354 = vsub.f32 %v164, %v253
    %v355 = vsub.f32 %v169, %v258
    %v356 = vsub.f32 %v340, %v159
    %v357 = vsub.f32 %v345, %v164
    %v358 = vsub.f32 %v350, %v169
    %v359 = vsub.f32 %v356, %v248
    %v360 = vsub.f32 %v357, %v253
    %v361 = vsub.f32 %v358, %v258
    %v363 = vsel %vm82, %v56, 0
    %v366 = vsel %vm82, %v57, 0
    %v369 = vsel %vm82, %v58, 0
    %371 = vmatprep.subr.mxu0 0.0
    %372 = vmatpush1.msra.mxu0 %v353
    %373 = vmatprep.subr.mxu0 0.0
    %374 = vmatpush1.msra.mxu0 %v354
    %375 = vmatprep.subr.mxu0 0.0
    %376 = vmatpush1.msra.mxu0 %v355
    %377 = vmatprep.subr.mxu0 0.0
    %378 = vmatpush1.msra.mxu0 0.0
    %379 = vmatprep.subr.mxu0 0.0
    %380 = vmatpush1.msra.mxu0 0.0
    %381 = vmatprep.subr.mxu0 0.0
    %382 = vmatpush1.msra.mxu0 0.0
    %383 = vmatprep.subr.mxu0 0.0
    %384 = vmatpush1.msra.mxu0 0.0
    %385 = vmatprep.subr.mxu0 0.0
    %386 = vmatpush1.msra.mxu0 0.0
    %387 = vmatprep.subr.mxu0 0.0
    %388 = vmatpush1.msra.mxu0 0.0
    %389 = vmatprep.subr.mxu0 0.0
    %390 = vmatpush1.msra.mxu0 0.0
    %391 = vmatprep.subr.mxu0 0.0
    %392 = vmatpush1.msra.mxu0 0.0
    %393 = vmatprep.subr.mxu0 0.0
    %394 = vmatpush1.msra.mxu0 0.0
    %395 = vmatprep.subr.mxu0 0.0
    %396 = vmatpush1.msra.mxu0 0.0
    %397 = vmatprep.subr.mxu0 0.0
    %398 = vmatpush1.msra.mxu0 0.0
    %399 = vmatprep.subr.mxu0 0.0
    %400 = vmatpush1.msra.mxu0 0.0
    %401 = vmatprep.subr.mxu0 0.0
    %402 = vmatpush1.msra.mxu0 0.0
    %403 = vmatprep.subr.mxu0 0.0
    %404 = vmatpush1.msra.mxu0 0.0
    %405 = vmatprep.subr.mxu0 0.0
    %406 = vmatpush1.msra.mxu0 0.0
    %407 = vmatprep.subr.mxu0 0.0
    %408 = vmatpush1.msra.mxu0 0.0
    %409 = vmatprep.subr.mxu0 0.0
    %410 = vmatpush1.msra.mxu0 0.0
    %411 = vmatprep.subr.mxu0 0.0
    %412 = vmatpush1.msra.mxu0 0.0
    %413 = vmatprep.subr.mxu0 0.0
    %414 = vmatpush1.msra.mxu0 0.0
    %415 = vmatprep.subr.mxu0 0.0
    %416 = vmatpush1.msra.mxu0 0.0
    %417 = vmatprep.subr.mxu0 0.0
    %418 = vmatpush1.msra.mxu0 0.0
    %419 = vmatprep.subr.mxu0 0.0
    %420 = vmatpush1.msra.mxu0 0.0
    %421 = vmatprep.subr.mxu0 0.0
    %422 = vmatpush1.msra.mxu0 0.0
    %423 = vmatprep.subr.mxu0 0.0
    %424 = vmatpush1.msra.mxu0 0.0
    %425 = vmatprep.subr.mxu0 0.0
    %426 = vmatpush1.msra.mxu0 0.0
    %427 = vmatprep.subr.mxu0 0.0
    %428 = vmatpush1.msra.mxu0 0.0
    %429 = vmatprep.subr.mxu0 0.0
    %430 = vmatpush1.msra.mxu0 0.0
    %431 = vmatprep.subr.mxu0 0.0
    %432 = vmatpush1.msra.mxu0 0.0
    %433 = vmatprep.subr.mxu0 0.0
    %434 = vmatpush1.msra.mxu0 0.0
    %435 = vmatprep.mubr.f32.mxu0 0.0
    %436 = vmatmul.mubr.f32.gmra.mrb[0].mxu0 %v363
    %v437 = vpop.f32.mrb[0].mxu0
    %v438 = vadd.f32 0.0, %v437
    %v439 = vpop.f32.mrb[0].mxu0
    %440 = vmatprep.mubr.f32.mxu0 0.0
    %441 = vmatmul.mubr.f32.gmra.mrb[0].mxu0 %v366
    %v442 = vpop.f32.mrb[0].mxu0
    %v443 = vadd.f32 0.0, %v442
    %v444 = vpop.f32.mrb[0].mxu0
    %445 = vmatprep.mubr.f32.mxu0 0.0
    %446 = vmatmul.mubr.f32.gmra.mrb[0].mxu0 %v369
    %v447 = vpop.f32.mrb[0].mxu0
    %v448 = vadd.f32 0.0, %v447
    %v449 = vpop.f32.mrb[0].mxu0
    %450 = vdwg.mxu0
    %v452 = vsel %vm82, %v59, 0
    %v455 = vsel %vm82, %v60, 0
    %v458 = vsel %vm82, %v61, 0
    %460 = vmatprep.subr.mxu0 0.0
    %461 = vmatpush1.msra.mxu0 %v359
    %462 = vmatprep.subr.mxu0 0.0
    %463 = vmatpush1.msra.mxu0 %v360
    %464 = vmatprep.subr.mxu0 0.0
    %465 = vmatpush1.msra.mxu0 %v361
    %466 = vmatprep.subr.mxu0 0.0
    %467 = vmatpush1.msra.mxu0 0.0
    %468 = vmatprep.subr.mxu0 0.0
    %469 = vmatpush1.msra.mxu0 0.0
    %470 = vmatprep.subr.mxu0 0.0
    %471 = vmatpush1.msra.mxu0 0.0
    %472 = vmatprep.subr.mxu0 0.0
    %473 = vmatpush1.msra.mxu0 0.0
    %474 = vmatprep.subr.mxu0 0.0
    %475 = vmatpush1.msra.mxu0 0.0
    %476 = vmatprep.subr.mxu0 0.0
    %477 = vmatpush1.msra.mxu0 0.0
    %478 = vmatprep.subr.mxu0 0.0
    %479 = vmatpush1.msra.mxu0 0.0
    %480 = vmatprep.subr.mxu0 0.0
    %481 = vmatpush1.msra.mxu0 0.0
    %482 = vmatprep.subr.mxu0 0.0
    %483 = vmatpush1.msra.mxu0 0.0
    %484 = vmatprep.subr.mxu0 0.0
    %485 = vmatpush1.msra.mxu0 0.0
    %486 = vmatprep.subr.mxu0 0.0
    %487 = vmatpush1.msra.mxu0 0.0
    %488 = vmatprep.subr.mxu0 0.0
    %489 = vmatpush1.msra.mxu0 0.0
    %490 = vmatprep.subr.mxu0 0.0
    %491 = vmatpush1.msra.mxu0 0.0
    %492 = vmatprep.subr.mxu0 0.0
    %493 = vmatpush1.msra.mxu0 0.0
    %494 = vmatprep.subr.mxu0 0.0
    %495 = vmatpush1.msra.mxu0 0.0
    %496 = vmatprep.subr.mxu0 0.0
    %497 = vmatpush1.msra.mxu0 0.0
    %498 = vmatprep.subr.mxu0 0.0
    %499 = vmatpush1.msra.mxu0 0.0
    %500 = vmatprep.subr.mxu0 0.0
    %501 = vmatpush1.msra.mxu0 0.0
    %502 = vmatprep.subr.mxu0 0.0
    %503 = vmatpush1.msra.mxu0 0.0
    %504 = vmatprep.subr.mxu0 0.0
    %505 = vmatpush1.msra.mxu0 0.0
    %506 = vmatprep.subr.mxu0 0.0
    %507 = vmatpush1.msra.mxu0 0.0
    %508 = vmatprep.subr.mxu0 0.0
    %509 = vmatpush1.msra.mxu0 0.0
    %510 = vmatprep.subr.mxu0 0.0
    %511 = vmatpush1.msra.mxu0 0.0
    %512 = vmatprep.subr.mxu0 0.0
    %513 = vmatpush1.msra.mxu0 0.0
    %514 = vmatprep.subr.mxu0 0.0
    %515 = vmatpush1.msra.mxu0 0.0
    %516 = vmatprep.subr.mxu0 0.0
    %517 = vmatpush1.msra.mxu0 0.0
    %518 = vmatprep.subr.mxu0 0.0
    %519 = vmatpush1.msra.mxu0 0.0
    %520 = vmatprep.subr.mxu0 0.0
    %521 = vmatpush1.msra.mxu0 0.0
    %522 = vmatprep.subr.mxu0 0.0
    %523 = vmatpush1.msra.mxu0 0.0
    %524 = vmatprep.mubr.f32.mxu0 0.0
    %525 = vmatmul.mubr.f32.gmra.mrb[0].mxu0 %v452
    %v526 = vpop.f32.mrb[0].mxu0
    %v527 = vadd.f32 0.0, %v526
    %v528 = vpop.f32.mrb[0].mxu0
    %529 = vmatprep.mubr.f32.mxu0 0.0
    %530 = vmatmul.mubr.f32.gmra.mrb[0].mxu0 %v455
    %v531 = vpop.f32.mrb[0].mxu0
    %v532 = vadd.f32 0.0, %v531
    %v533 = vpop.f32.mrb[0].mxu0
    %534 = vmatprep.mubr.f32.mxu0 0.0
    %535 = vmatmul.mubr.f32.gmra.mrb[0].mxu0 %v458
    %v536 = vpop.f32.mrb[0].mxu0
    %v537 = vadd.f32 0.0, %v536
    %v538 = vpop.f32.mrb[0].mxu0
    %539 = vdwg.mxu0
    %v540 = vadd.f32 %v353, %v359
    %v541 = vadd.f32 %v354, %v360
    %v542 = vadd.f32 %v355, %v361
    %v544 = vsel %vm82, %v62, 0
    %v547 = vsel %vm82, %v63, 0
    %v550 = vsel %vm82, %v64, 0
    %552 = vmatprep.subr.mxu0 0.0
    %553 = vmatpush1.msra.mxu0 %v540
    %554 = vmatprep.subr.mxu0 0.0
    %555 = vmatpush1.msra.mxu0 %v541
    %556 = vmatprep.subr.mxu0 0.0
    %557 = vmatpush1.msra.mxu0 %v542
    %558 = vmatprep.subr.mxu0 0.0
    %559 = vmatpush1.msra.mxu0 0.0
    %560 = vmatprep.subr.mxu0 0.0
    %561 = vmatpush1.msra.mxu0 0.0
    %562 = vmatprep.subr.mxu0 0.0
    %563 = vmatpush1.msra.mxu0 0.0
    %564 = vmatprep.subr.mxu0 0.0
    %565 = vmatpush1.msra.mxu0 0.0
    %566 = vmatprep.subr.mxu0 0.0
    %567 = vmatpush1.msra.mxu0 0.0
    %568 = vmatprep.subr.mxu0 0.0
    %569 = vmatpush1.msra.mxu0 0.0
    %570 = vmatprep.subr.mxu0 0.0
    %571 = vmatpush1.msra.mxu0 0.0
    %572 = vmatprep.subr.mxu0 0.0
    %573 = vmatpush1.msra.mxu0 0.0
    %574 = vmatprep.subr.mxu0 0.0
    %575 = vmatpush1.msra.mxu0 0.0
    %576 = vmatprep.subr.mxu0 0.0
    %577 = vmatpush1.msra.mxu0 0.0
    %578 = vmatprep.subr.mxu0 0.0
    %579 = vmatpush1.msra.mxu0 0.0
    %580 = vmatprep.subr.mxu0 0.0
    %581 = vmatpush1.msra.mxu0 0.0
    %582 = vmatprep.subr.mxu0 0.0
    %583 = vmatpush1.msra.mxu0 0.0
    %584 = vmatprep.subr.mxu0 0.0
    %585 = vmatpush1.msra.mxu0 0.0
    %586 = vmatprep.subr.mxu0 0.0
    %587 = vmatpush1.msra.mxu0 0.0
    %588 = vmatprep.subr.mxu0 0.0
    %589 = vmatpush1.msra.mxu0 0.0
    %590 = vmatprep.subr.mxu0 0.0
    %591 = vmatpush1.msra.mxu0 0.0
    %592 = vmatprep.subr.mxu0 0.0
    %593 = vmatpush1.msra.mxu0 0.0
    %594 = vmatprep.subr.mxu0 0.0
    %595 = vmatpush1.msra.mxu0 0.0
    %596 = vmatprep.subr.mxu0 0.0
    %597 = vmatpush1.msra.mxu0 0.0
    %598 = vmatprep.subr.mxu0 0.0
    %599 = vmatpush1.msra.mxu0 0.0
    %600 = vmatprep.subr.mxu0 0.0
    %601 = vmatpush1.msra.mxu0 0.0
    %602 = vmatprep.subr.mxu0 0.0
    %603 = vmatpush1.msra.mxu0 0.0
    %604 = vmatprep.subr.mxu0 0.0
    %605 = vmatpush1.msra.mxu0 0.0
    %606 = vmatprep.subr.mxu0 0.0
    %607 = vmatpush1.msra.mxu0 0.0
    %608 = vmatprep.subr.mxu0 0.0
    %609 = vmatpush1.msra.mxu0 0.0
    %610 = vmatprep.subr.mxu0 0.0
    %611 = vmatpush1.msra.mxu0 0.0
    %612 = vmatprep.subr.mxu0 0.0
    %613 = vmatpush1.msra.mxu0 0.0
    %614 = vmatprep.subr.mxu0 0.0
    %615 = vmatpush1.msra.mxu0 0.0
    %616 = vmatprep.mubr.f32.mxu0 0.0
    %617 = vmatmul.mubr.f32.gmra.mrb[0].mxu0 %v544
    %v618 = vpop.f32.mrb[0].mxu0
    %v619 = vadd.f32 0.0, %v618
    %v620 = vpop.f32.mrb[0].mxu0
    %621 = vmatprep.mubr.f32.mxu0 0.0
    %622 = vmatmul.mubr.f32.gmra.mrb[0].mxu0 %v547
    %v623 = vpop.f32.mrb[0].mxu0
    %v624 = vadd.f32 0.0, %v623
    %v625 = vpop.f32.mrb[0].mxu0
    %626 = vmatprep.mubr.f32.mxu0 0.0
    %627 = vmatmul.mubr.f32.gmra.mrb[0].mxu0 %v550
    %v628 = vpop.f32.mrb[0].mxu0
    %v629 = vadd.f32 0.0, %v628
    %v630 = vpop.f32.mrb[0].mxu0
    %631 = vdwg.mxu0
    %v632 = vsub.f32 %v438, %v527
    %v633 = vsub.f32 %v443, %v532
    %v634 = vsub.f32 %v448, %v537
    %v635 = vsub.f32 %v619, %v438
    %v636 = vsub.f32 %v624, %v443
    %v637 = vsub.f32 %v629, %v448
    %v638 = vsub.f32 %v635, %v527
    %v639 = vsub.f32 %v636, %v532
    %v640 = vsub.f32 %v637, %v537
    %v641 = vadd.f32 %v632, %v353
    %v642 = vadd.f32 %v633, %v354
    %v643 = vadd.f32 %v634, %v355
    %v644 = vadd.f32 %v638, %v359
    %v645 = vadd.f32 %v639, %v360
    %v646 = vadd.f32 %v640, %v361
    %647 = vmatprep.subr.mxu0 0.0
    %648 = vmatpush1.msra.mxu0 %v641
    %649 = vmatprep.subr.mxu0 0.0
    %650 = vmatpush1.msra.mxu0 %v642
    %651 = vmatprep.subr.mxu0 0.0
    %652 = vmatpush1.msra.mxu0 %v643
    %653 = vmatprep.subr.mxu0 0.0
    %654 = vmatpush1.msra.mxu0 0.0
    %655 = vmatprep.subr.mxu0 0.0
    %656 = vmatpush1.msra.mxu0 0.0
    %657 = vmatprep.subr.mxu0 0.0
    %658 = vmatpush1.msra.mxu0 0.0
    %659 = vmatprep.subr.mxu0 0.0
    %660 = vmatpush1.msra.mxu0 0.0
    %661 = vmatprep.subr.mxu0 0.0
    %662 = vmatpush1.msra.mxu0 0.0
    %663 = vmatprep.subr.mxu0 0.0
    %664 = vmatpush1.msra.mxu0 0.0
    %665 = vmatprep.subr.mxu0 0.0
    %666 = vmatpush1.msra.mxu0 0.0
    %667 = vmatprep.subr.mxu0 0.0
    %668 = vmatpush1.msra.mxu0 0.0
    %669 = vmatprep.subr.mxu0 0.0
    %670 = vmatpush1.msra.mxu0 0.0
    %671 = vmatprep.subr.mxu0 0.0
    %672 = vmatpush1.msra.mxu0 0.0
    %673 = vmatprep.subr.mxu0 0.0
    %674 = vmatpush1.msra.mxu0 0.0
    %675 = vmatprep.subr.mxu0 0.0
    %676 = vmatpush1.msra.mxu0 0.0
    %677 = vmatprep.subr.mxu0 0.0
    %678 = vmatpush1.msra.mxu0 0.0
    %679 = vmatprep.subr.mxu0 0.0
    %680 = vmatpush1.msra.mxu0 0.0
    %681 = vmatprep.subr.mxu0 0.0
    %682 = vmatpush1.msra.mxu0 0.0
    %683 = vmatprep.subr.mxu0 0.0
    %684 = vmatpush1.msra.mxu0 0.0
    %685 = vmatprep.subr.mxu0 0.0
    %686 = vmatpush1.msra.mxu0 0.0
    %687 = vmatprep.subr.mxu0 0.0
    %688 = vmatpush1.msra.mxu0 0.0
    %689 = vmatprep.subr.mxu0 0.0
    %690 = vmatpush1.msra.mxu0 0.0
    %691 = vmatprep.subr.mxu0 0.0
    %692 = vmatpush1.msra.mxu0 0.0
    %693 = vmatprep.subr.mxu0 0.0
    %694 = vmatpush1.msra.mxu0 0.0
    %695 = vmatprep.subr.mxu0 0.0
    %696 = vmatpush1.msra.mxu0 0.0
    %697 = vmatprep.subr.mxu0 0.0
    %698 = vmatpush1.msra.mxu0 0.0
    %699 = vmatprep.subr.mxu0 0.0
    %700 = vmatpush1.msra.mxu0 0.0
    %701 = vmatprep.subr.mxu0 0.0
    %702 = vmatpush1.msra.mxu0 0.0
    %703 = vmatprep.subr.mxu0 0.0
    %704 = vmatpush1.msra.mxu0 0.0
    %705 = vmatprep.subr.mxu0 0.0
    %706 = vmatpush1.msra.mxu0 0.0
    %707 = vmatprep.subr.mxu0 0.0
    %708 = vmatpush1.msra.mxu0 0.0
    %709 = vmatprep.subr.mxu0 0.0
    %710 = vmatpush1.msra.mxu0 0.0
    %711 = vmatprep.mubr.f32.mxu0 0.0
    %712 = vmatmul.mubr.f32.gmra.mrb[0].mxu0 %v363
    %v713 = vpop.f32.mrb[0].mxu0
    %v714 = vadd.f32 0.0, %v713
    %v715 = vpop.f32.mrb[0].mxu0
    %716 = vmatprep.mubr.f32.mxu0 0.0
    %717 = vmatmul.mubr.f32.gmra.mrb[0].mxu0 %v366
    %v718 = vpop.f32.mrb[0].mxu0
    %v719 = vadd.f32 0.0, %v718
    %v720 = vpop.f32.mrb[0].mxu0
    %721 = vmatprep.mubr.f32.mxu0 0.0
    %722 = vmatmul.mubr.f32.gmra.mrb[0].mxu0 %v369
    %v723 = vpop.f32.mrb[0].mxu0
    %v724 = vadd.f32 0.0, %v723
    %v725 = vpop.f32.mrb[0].mxu0
    %726 = vdwg.mxu0
    %727 = vmatprep.subr.mxu0 0.0
    %728 = vmatpush1.msra.mxu0 %v644
    %729 = vmatprep.subr.mxu0 0.0
    %730 = vmatpush1.msra.mxu0 %v645
    %731 = vmatprep.subr.mxu0 0.0
    %732 = vmatpush1.msra.mxu0 %v646
    %733 = vmatprep.subr.mxu0 0.0
    %734 = vmatpush1.msra.mxu0 0.0
    %735 = vmatprep.subr.mxu0 0.0
    %736 = vmatpush1.msra.mxu0 0.0
    %737 = vmatprep.subr.mxu0 0.0
    %738 = vmatpush1.msra.mxu0 0.0
    %739 = vmatprep.subr.mxu0 0.0
    %740 = vmatpush1.msra.mxu0 0.0
    %741 = vmatprep.subr.mxu0 0.0
    %742 = vmatpush1.msra.mxu0 0.0
    %743 = vmatprep.subr.mxu0 0.0
    %744 = vmatpush1.msra.mxu0 0.0
    %745 = vmatprep.subr.mxu0 0.0
    %746 = vmatpush1.msra.mxu0 0.0
    %747 = vmatprep.subr.mxu0 0.0
    %748 = vmatpush1.msra.mxu0 0.0
    %749 = vmatprep.subr.mxu0 0.0
    %750 = vmatpush1.msra.mxu0 0.0
    %751 = vmatprep.subr.mxu0 0.0
    %752 = vmatpush1.msra.mxu0 0.0
    %753 = vmatprep.subr.mxu0 0.0
    %754 = vmatpush1.msra.mxu0 0.0
    %755 = vmatprep.subr.mxu0 0.0
    %756 = vmatpush1.msra.mxu0 0.0
    %757 = vmatprep.subr.mxu0 0.0
    %758 = vmatpush1.msra.mxu0 0.0
    %759 = vmatprep.subr.mxu0 0.0
    %760 = vmatpush1.msra.mxu0 0.0
    %761 = vmatprep.subr.mxu0 0.0
    %762 = vmatpush1.msra.mxu0 0.0
    %763 = vmatprep.subr.mxu0 0.0
    %764 = vmatpush1.msra.mxu0 0.0
    %765 = vmatprep.subr.mxu0 0.0
    %766 = vmatpush1.msra.mxu0 0.0
    %767 = vmatprep.subr.mxu0 0.0
    %768 = vmatpush1.msra.mxu0 0.0
    %769 = vmatprep.subr.mxu0 0.0
    %770 = vmatpush1.msra.mxu0 0.0
    %771 = vmatprep.subr.mxu0 0.0
    %772 = vmatpush1.msra.mxu0 0.0
    %773 = vmatprep.subr.mxu0 0.0
    %774 = vmatpush1.msra.mxu0 0.0
    %775 = vmatprep.subr.mxu0 0.0
    %776 = vmatpush1.msra.mxu0 0.0
    %777 = vmatprep.subr.mxu0 0.0
    %778 = vmatpush1.msra.mxu0 0.0
    %779 = vmatprep.subr.mxu0 0.0
    %780 = vmatpush1.msra.mxu0 0.0
    %781 = vmatprep.subr.mxu0 0.0
    %782 = vmatpush1.msra.mxu0 0.0
    %783 = vmatprep.subr.mxu0 0.0
    %784 = vmatpush1.msra.mxu0 0.0
    %785 = vmatprep.subr.mxu0 0.0
    %786 = vmatpush1.msra.mxu0 0.0
    %787 = vmatprep.subr.mxu0 0.0
    %788 = vmatpush1.msra.mxu0 0.0
    %789 = vmatprep.subr.mxu0 0.0
    %790 = vmatpush1.msra.mxu0 0.0
    %791 = vmatprep.mubr.f32.mxu0 0.0
    %792 = vmatmul.mubr.f32.gmra.mrb[0].mxu0 %v452
    %v793 = vpop.f32.mrb[0].mxu0
    %v794 = vadd.f32 0.0, %v793
    %v795 = vpop.f32.mrb[0].mxu0
    %796 = vmatprep.mubr.f32.mxu0 0.0
    %797 = vmatmul.mubr.f32.gmra.mrb[0].mxu0 %v455
    %v798 = vpop.f32.mrb[0].mxu0
    %v799 = vadd.f32 0.0, %v798
    %v800 = vpop.f32.mrb[0].mxu0
    %801 = vmatprep.mubr.f32.mxu0 0.0
    %802 = vmatmul.mubr.f32.gmra.mrb[0].mxu0 %v458
    %v803 = vpop.f32.mrb[0].mxu0
    %v804 = vadd.f32 0.0, %v803
    %v805 = vpop.f32.mrb[0].mxu0
    %806 = vdwg.mxu0
    %v807 = vadd.f32 %v641, %v644
    %v808 = vadd.f32 %v642, %v645
    %v809 = vadd.f32 %v643, %v646
    %810 = vmatprep.subr.mxu0 0.0
    %811 = vmatpush1.msra.mxu0 %v807
    %812 = vmatprep.subr.mxu0 0.0
    %813 = vmatpush1.msra.mxu0 %v808
    %814 = vmatprep.subr.mxu0 0.0
    %815 = vmatpush1.msra.mxu0 %v809
    %816 = vmatprep.subr.mxu0 0.0
    %817 = vmatpush1.msra.mxu0 0.0
    %818 = vmatprep.subr.mxu0 0.0
    %819 = vmatpush1.msra.mxu0 0.0
    %820 = vmatprep.subr.mxu0 0.0
    %821 = vmatpush1.msra.mxu0 0.0
    %822 = vmatprep.subr.mxu0 0.0
    %823 = vmatpush1.msra.mxu0 0.0
    %824 = vmatprep.subr.mxu0 0.0
    %825 = vmatpush1.msra.mxu0 0.0
    %826 = vmatprep.subr.mxu0 0.0
    %827 = vmatpush1.msra.mxu0 0.0
    %828 = vmatprep.subr.mxu0 0.0
    %829 = vmatpush1.msra.mxu0 0.0
    %830 = vmatprep.subr.mxu0 0.0
    %831 = vmatpush1.msra.mxu0 0.0
    %832 = vmatprep.subr.mxu0 0.0
    %833 = vmatpush1.msra.mxu0 0.0
    %834 = vmatprep.subr.mxu0 0.0
    %835 = vmatpush1.msra.mxu0 0.0
    %836 = vmatprep.subr.mxu0 0.0
    %837 = vmatpush1.msra.mxu0 0.0
    %838 = vmatprep.subr.mxu0 0.0
    %839 = vmatpush1.msra.mxu0 0.0
    %840 = vmatprep.subr.mxu0 0.0
    %841 = vmatpush1.msra.mxu0 0.0
    %842 = vmatprep.subr.mxu0 0.0
    %843 = vmatpush1.msra.mxu0 0.0
    %844 = vmatprep.subr.mxu0 0.0
    %845 = vmatpush1.msra.mxu0 0.0
    %846 = vmatprep.subr.mxu0 0.0
    %847 = vmatpush1.msra.mxu0 0.0
    %848 = vmatprep.subr.mxu0 0.0
    %849 = vmatpush1.msra.mxu0 0.0
    %850 = vmatprep.subr.mxu0 0.0
    %851 = vmatpush1.msra.mxu0 0.0
    %852 = vmatprep.subr.mxu0 0.0
    %853 = vmatpush1.msra.mxu0 0.0
    %854 = vmatprep.subr.mxu0 0.0
    %855 = vmatpush1.msra.mxu0 0.0
    %856 = vmatprep.subr.mxu0 0.0
    %857 = vmatpush1.msra.mxu0 0.0
    %858 = vmatprep.subr.mxu0 0.0
    %859 = vmatpush1.msra.mxu0 0.0
    %860 = vmatprep.subr.mxu0 0.0
    %861 = vmatpush1.msra.mxu0 0.0
    %862 = vmatprep.subr.mxu0 0.0
    %863 = vmatpush1.msra.mxu0 0.0
    %864 = vmatprep.subr.mxu0 0.0
    %865 = vmatpush1.msra.mxu0 0.0
    %866 = vmatprep.subr.mxu0 0.0
    %867 = vmatpush1.msra.mxu0 0.0
    %868 = vmatprep.subr.mxu0 0.0
    %869 = vmatpush1.msra.mxu0 0.0
    %870 = vmatprep.subr.mxu0 0.0
    %871 = vmatpush1.msra.mxu0 0.0
    %872 = vmatprep.subr.mxu0 0.0
    %873 = vmatpush1.msra.mxu0 0.0
    %874 = vmatprep.mubr.f32.mxu0 0.0
    %875 = vmatmul.mubr.f32.gmra.mrb[0].mxu0 %v544
    %v876 = vpop.f32.mrb[0].mxu0
    %v877 = vadd.f32 0.0, %v876
    %v878 = vpop.f32.mrb[0].mxu0
    %879 = vmatprep.mubr.f32.mxu0 0.0
    %880 = vmatmul.mubr.f32.gmra.mrb[0].mxu0 %v547
    %v881 = vpop.f32.mrb[0].mxu0
    %v882 = vadd.f32 0.0, %v881
    %v883 = vpop.f32.mrb[0].mxu0
    %884 = vmatprep.mubr.f32.mxu0 0.0
    %885 = vmatmul.mubr.f32.gmra.mrb[0].mxu0 %v550
    %v886 = vpop.f32.mrb[0].mxu0
    %v887 = vadd.f32 0.0, %v886
    %v888 = vpop.f32.mrb[0].mxu0
    %889 = vdwg.mxu0
    %v890 = vsub.f32 %v714, %v794
    %v891 = vsub.f32 %v719, %v799
    %v892 = vsub.f32 %v724, %v804
    %v893 = vsub.f32 %v877, %v714
    %v894 = vsub.f32 %v882, %v719
    %v895 = vsub.f32 %v887, %v724
    %v896 = vsub.f32 %v893, %v794
    %v897 = vsub.f32 %v894, %v799
    %v898 = vsub.f32 %v895, %v804
    %v899 = vadd.f32 %v890, %v353
    %v900 = vadd.f32 %v891, %v354
    %v901 = vadd.f32 %v892, %v355
    %v902 = vadd.f32 %v896, %v359
    %v903 = vadd.f32 %v897, %v360
    %v904 = vadd.f32 %v898, %v361
    %s905 = sld [smem:[#allocation3]]
    %v906 = vstv %s905
    %v907 = vmul.f32 %v906, %v899
    %v908 = vmul.f32 %v906, %v900
    %v909 = vmul.f32 %v906, %v901
    %s910 = sld [smem:[#allocation6]]
    %v911 = vstv %s910
    %v912 = vmul.f32 %v911, %v902
    %v913 = vmul.f32 %v911, %v903
    %v914 = vmul.f32 %v911, %v904
    %v915 = vsub.f32 %v907, %v912
    %v916 = vsub.f32 %v908, %v913
    %v917 = vsub.f32 %v909, %v914
    %v918 = vmul.f32 %v915, 2.0
    %v919 = vmul.f32 %v916, 2.0
    %v920 = vmul.f32 %v917, 2.0
    %v921 = vadd.f32 %v79, %v918
    %v922 = vadd.f32 %v80, %v919
    %v923 = vadd.f32 %v81, %v920
    %924 = vmatprep.subr.mxu0 0.0
    %925 = vmatpush1.msra.mxu0 %v899
    %926 = vmatprep.subr.mxu0 0.0
    %927 = vmatpush1.msra.mxu0 %v900
    %928 = vmatprep.subr.mxu0 0.0
    %929 = vmatpush1.msra.mxu0 %v901
    %930 = vmatprep.subr.mxu0 0.0
    %931 = vmatpush1.msra.mxu0 0.0
    %932 = vmatprep.subr.mxu0 0.0
    %933 = vmatpush1.msra.mxu0 0.0
    %934 = vmatprep.subr.mxu0 0.0
    %935 = vmatpush1.msra.mxu0 0.0
    %936 = vmatprep.subr.mxu0 0.0
    %937 = vmatpush1.msra.mxu0 0.0
    %938 = vmatprep.subr.mxu0 0.0
    %939 = vmatpush1.msra.mxu0 0.0
    %940 = vmatprep.subr.mxu0 0.0
    %941 = vmatpush1.msra.mxu0 0.0
    %942 = vmatprep.subr.mxu0 0.0
    %943 = vmatpush1.msra.mxu0 0.0
    %944 = vmatprep.subr.mxu0 0.0
    %945 = vmatpush1.msra.mxu0 0.0
    %946 = vmatprep.subr.mxu0 0.0
    %947 = vmatpush1.msra.mxu0 0.0
    %948 = vmatprep.subr.mxu0 0.0
    %949 = vmatpush1.msra.mxu0 0.0
    %950 = vmatprep.subr.mxu0 0.0
    %951 = vmatpush1.msra.mxu0 0.0
    %952 = vmatprep.subr.mxu0 0.0
    %953 = vmatpush1.msra.mxu0 0.0
    %954 = vmatprep.subr.mxu0 0.0
    %955 = vmatpush1.msra.mxu0 0.0
    %956 = vmatprep.subr.mxu0 0.0
    %957 = vmatpush1.msra.mxu0 0.0
    %958 = vmatprep.subr.mxu0 0.0
    %959 = vmatpush1.msra.mxu0 0.0
    %960 = vmatprep.subr.mxu0 0.0
    %961 = vmatpush1.msra.mxu0 0.0
    %962 = vmatprep.subr.mxu0 0.0
    %963 = vmatpush1.msra.mxu0 0.0
    %964 = vmatprep.subr.mxu0 0.0
    %965 = vmatpush1.msra.mxu0 0.0
    %966 = vmatprep.subr.mxu0 0.0
    %967 = vmatpush1.msra.mxu0 0.0
    %968 = vmatprep.subr.mxu0 0.0
    %969 = vmatpush1.msra.mxu0 0.0
    %970 = vmatprep.subr.mxu0 0.0
    %971 = vmatpush1.msra.mxu0 0.0
    %972 = vmatprep.subr.mxu0 0.0
    %973 = vmatpush1.msra.mxu0 0.0
    %974 = vmatprep.subr.mxu0 0.0
    %975 = vmatpush1.msra.mxu0 0.0
    %976 = vmatprep.subr.mxu0 0.0
    %977 = vmatpush1.msra.mxu0 0.0
    %978 = vmatprep.subr.mxu0 0.0
    %979 = vmatpush1.msra.mxu0 0.0
    %980 = vmatprep.subr.mxu0 0.0
    %981 = vmatpush1.msra.mxu0 0.0
    %982 = vmatprep.subr.mxu0 0.0
    %983 = vmatpush1.msra.mxu0 0.0
    %984 = vmatprep.subr.mxu0 0.0
    %985 = vmatpush1.msra.mxu0 0.0
    %986 = vmatprep.subr.mxu0 0.0
    %987 = vmatpush1.msra.mxu0 0.0
    %988 = vmatprep.mubr.f32.mxu0 0.0
    %989 = vmatmul.mubr.f32.gmra.mrb[0].mxu0 %v84
    %v990 = vpop.f32.mrb[0].mxu0
    %v991 = vadd.f32 0.0, %v990
    %v992 = vpop.f32.mrb[0].mxu0
    %993 = vmatprep.mubr.f32.mxu0 0.0
    %994 = vmatmul.mubr.f32.gmra.mrb[0].mxu0 %v87
    %v995 = vpop.f32.mrb[0].mxu0
    %v996 = vadd.f32 0.0, %v995
    %v997 = vpop.f32.mrb[0].mxu0
    %998 = vmatprep.mubr.f32.mxu0 0.0
    %999 = vmatmul.mubr.f32.gmra.mrb[0].mxu0 %v90
    %v1000 = vpop.f32.mrb[0].mxu0
    %v1001 = vadd.f32 0.0, %v1000
    %v1002 = vpop.f32.mrb[0].mxu0
    %1003 = vdwg.mxu0
    %1004 = vmatprep.subr.mxu0 0.0
    %1005 = vmatpush1.msra.mxu0 %v902
    %1006 = vmatprep.subr.mxu0 0.0
    %1007 = vmatpush1.msra.mxu0 %v903
    %1008 = vmatprep.subr.mxu0 0.0
    %1009 = vmatpush1.msra.mxu0 %v904
    %1010 = vmatprep.subr.mxu0 0.0
    %1011 = vmatpush1.msra.mxu0 0.0
    %1012 = vmatprep.subr.mxu0 0.0
    %1013 = vmatpush1.msra.mxu0 0.0
    %1014 = vmatprep.subr.mxu0 0.0
    %1015 = vmatpush1.msra.mxu0 0.0
    %1016 = vmatprep.subr.mxu0 0.0
    %1017 = vmatpush1.msra.mxu0 0.0
    %1018 = vmatprep.subr.mxu0 0.0
    %1019 = vmatpush1.msra.mxu0 0.0
    %1020 = vmatprep.subr.mxu0 0.0
    %1021 = vmatpush1.msra.mxu0 0.0
    %1022 = vmatprep.subr.mxu0 0.0
    %1023 = vmatpush1.msra.mxu0 0.0
    %1024 = vmatprep.subr.mxu0 0.0
    %1025 = vmatpush1.msra.mxu0 0.0
    %1026 = vmatprep.subr.mxu0 0.0
    %1027 = vmatpush1.msra.mxu0 0.0
    %1028 = vmatprep.subr.mxu0 0.0
    %1029 = vmatpush1.msra.mxu0 0.0
    %1030 = vmatprep.subr.mxu0 0.0
    %1031 = vmatpush1.msra.mxu0 0.0
    %1032 = vmatprep.subr.mxu0 0.0
    %1033 = vmatpush1.msra.mxu0 0.0
    %1034 = vmatprep.subr.mxu0 0.0
    %1035 = vmatpush1.msra.mxu0 0.0
    %1036 = vmatprep.subr.mxu0 0.0
    %1037 = vmatpush1.msra.mxu0 0.0
    %1038 = vmatprep.subr.mxu0 0.0
    %1039 = vmatpush1.msra.mxu0 0.0
    %1040 = vmatprep.subr.mxu0 0.0
    %1041 = vmatpush1.msra.mxu0 0.0
    %1042 = vmatprep.subr.mxu0 0.0
    %1043 = vmatpush1.msra.mxu0 0.0
    %1044 = vmatprep.subr.mxu0 0.0
    %1045 = vmatpush1.msra.mxu0 0.0
    %1046 = vmatprep.subr.mxu0 0.0
    %1047 = vmatpush1.msra.mxu0 0.0
    %1048 = vmatprep.subr.mxu0 0.0
    %1049 = vmatpush1.msra.mxu0 0.0
    %1050 = vmatprep.subr.mxu0 0.0
    %1051 = vmatpush1.msra.mxu0 0.0
    %1052 = vmatprep.subr.mxu0 0.0
    %1053 = vmatpush1.msra.mxu0 0.0
    %1054 = vmatprep.subr.mxu0 0.0
    %1055 = vmatpush1.msra.mxu0 0.0
    %1056 = vmatprep.subr.mxu0 0.0
    %1057 = vmatpush1.msra.mxu0 0.0
    %1058 = vmatprep.subr.mxu0 0.0
    %1059 = vmatpush1.msra.mxu0 0.0
    %1060 = vmatprep.subr.mxu0 0.0
    %1061 = vmatpush1.msra.mxu0 0.0
    %1062 = vmatprep.subr.mxu0 0.0
    %1063 = vmatpush1.msra.mxu0 0.0
    %1064 = vmatprep.subr.mxu0 0.0
    %1065 = vmatpush1.msra.mxu0 0.0
    %1066 = vmatprep.subr.mxu0 0.0
    %1067 = vmatpush1.msra.mxu0 0.0
    %1068 = vmatprep.mubr.f32.mxu0 0.0
    %1069 = vmatmul.mubr.f32.gmra.mrb[0].mxu0 %v173
    %v1070 = vpop.f32.mrb[0].mxu0
    %v1071 = vadd.f32 0.0, %v1070
    %v1072 = vpop.f32.mrb[0].mxu0
    %1073 = vmatprep.mubr.f32.mxu0 0.0
    %1074 = vmatmul.mubr.f32.gmra.mrb[0].mxu0 %v176
    %v1075 = vpop.f32.mrb[0].mxu0
    %v1076 = vadd.f32 0.0, %v1075
    %v1077 = vpop.f32.mrb[0].mxu0
    %1078 = vmatprep.mubr.f32.mxu0 0.0
    %1079 = vmatmul.mubr.f32.gmra.mrb[0].mxu0 %v179
    %v1080 = vpop.f32.mrb[0].mxu0
    %v1081 = vadd.f32 0.0, %v1080
    %v1082 = vpop.f32.mrb[0].mxu0
    %1083 = vdwg.mxu0
    %v1084 = vadd.f32 %v899, %v902
    %v1085 = vadd.f32 %v900, %v903
    %v1086 = vadd.f32 %v901, %v904
    %1087 = vmatprep.subr.mxu0 0.0
    %1088 = vmatpush1.msra.mxu0 %v1084
    %1089 = vmatprep.subr.mxu0 0.0
    %1090 = vmatpush1.msra.mxu0 %v1085
    %1091 = vmatprep.subr.mxu0 0.0
    %1092 = vmatpush1.msra.mxu0 %v1086
    %1093 = vmatprep.subr.mxu0 0.0
    %1094 = vmatpush1.msra.mxu0 0.0
    %1095 = vmatprep.subr.mxu0 0.0
    %1096 = vmatpush1.msra.mxu0 0.0
    %1097 = vmatprep.subr.mxu0 0.0
    %1098 = vmatpush1.msra.mxu0 0.0
    %1099 = vmatprep.subr.mxu0 0.0
    %1100 = vmatpush1.msra.mxu0 0.0
    %1101 = vmatprep.subr.mxu0 0.0
    %1102 = vmatpush1.msra.mxu0 0.0
    %1103 = vmatprep.subr.mxu0 0.0
    %1104 = vmatpush1.msra.mxu0 0.0
    %1105 = vmatprep.subr.mxu0 0.0
    %1106 = vmatpush1.msra.mxu0 0.0
    %1107 = vmatprep.subr.mxu0 0.0
    %1108 = vmatpush1.msra.mxu0 0.0
    %1109 = vmatprep.subr.mxu0 0.0
    %1110 = vmatpush1.msra.mxu0 0.0
    %1111 = vmatprep.subr.mxu0 0.0
    %1112 = vmatpush1.msra.mxu0 0.0
    %1113 = vmatprep.subr.mxu0 0.0
    %1114 = vmatpush1.msra.mxu0 0.0
    %1115 = vmatprep.subr.mxu0 0.0
    %1116 = vmatpush1.msra.mxu0 0.0
    %1117 = vmatprep.subr.mxu0 0.0
    %1118 = vmatpush1.msra.mxu0 0.0
    %1119 = vmatprep.subr.mxu0 0.0
    %1120 = vmatpush1.msra.mxu0 0.0
    %1121 = vmatprep.subr.mxu0 0.0
    %1122 = vmatpush1.msra.mxu0 0.0
    %1123 = vmatprep.subr.mxu0 0.0
    %1124 = vmatpush1.msra.mxu0 0.0
    %1125 = vmatprep.subr.mxu0 0.0
    %1126 = vmatpush1.msra.mxu0 0.0
    %1127 = vmatprep.subr.mxu0 0.0
    %1128 = vmatpush1.msra.mxu0 0.0
    %1129 = vmatprep.subr.mxu0 0.0
    %1130 = vmatpush1.msra.mxu0 0.0
    %1131 = vmatprep.subr.mxu0 0.0
    %1132 = vmatpush1.msra.mxu0 0.0
    %1133 = vmatprep.subr.mxu0 0.0
    %1134 = vmatpush1.msra.mxu0 0.0
    %1135 = vmatprep.subr.mxu0 0.0
    %1136 = vmatpush1.msra.mxu0 0.0
    %1137 = vmatprep.subr.mxu0 0.0
    %1138 = vmatpush1.msra.mxu0 0.0
    %1139 = vmatprep.subr.mxu0 0.0
    %1140 = vmatpush1.msra.mxu0 0.0
    %1141 = vmatprep.subr.mxu0 0.0
    %1142 = vmatpush1.msra.mxu0 0.0
    %1143 = vmatprep.subr.mxu0 0.0
    %1144 = vmatpush1.msra.mxu0 0.0
    %1145 = vmatprep.subr.mxu0 0.0
    %1146 = vmatpush1.msra.mxu0 0.0
    %1147 = vmatprep.subr.mxu0 0.0
    %1148 = vmatpush1.msra.mxu0 0.0
    %1149 = vmatprep.subr.mxu0 0.0
    %1150 = vmatpush1.msra.mxu0 0.0
    %1151 = vmatprep.mubr.f32.mxu0 0.0
    %1152 = vmatmul.mubr.f32.gmra.mrb[0].mxu0 %v265
    %v1153 = vpop.f32.mrb[0].mxu0
    %v1154 = vadd.f32 0.0, %v1153
    %v1155 = vpop.f32.mrb[0].mxu0
    %1156 = vmatprep.mubr.f32.mxu0 0.0
    %1157 = vmatmul.mubr.f32.gmra.mrb[0].mxu0 %v268
    %v1158 = vpop.f32.mrb[0].mxu0
    %v1159 = vadd.f32 0.0, %v1158
    %v1160 = vpop.f32.mrb[0].mxu0
    %1161 = vmatprep.mubr.f32.mxu0 0.0
    %1162 = vmatmul.mubr.f32.gmra.mrb[0].mxu0 %v271
    %v1163 = vpop.f32.mrb[0].mxu0
    %v1164 = vadd.f32 0.0, %v1163
    %v1165 = vpop.f32.mrb[0].mxu0
    %1166 = vdwg.mxu0
    %v1167 = vsub.f32 %v991, %v1071
    %v1168 = vsub.f32 %v996, %v1076
    %v1169 = vsub.f32 %v1001, %v1081
    %v1170 = vsub.f32 %v1154, %v991
    %v1171 = vsub.f32 %v1159, %v996
    %v1172 = vsub.f32 %v1164, %v1001
    %v1173 = vsub.f32 %v1170, %v1071
    %v1174 = vsub.f32 %v1171, %v1076
    %v1175 = vsub.f32 %v1172, %v1081
    %1176 = vmatprep.subr.mxu0 0.0
    %1177 = vmatpush1.msra.mxu0 %v1167
    %1178 = vmatprep.subr.mxu0 0.0
    %1179 = vmatpush1.msra.mxu0 %v1168
    %1180 = vmatprep.subr.mxu0 0.0
    %1181 = vmatpush1.msra.mxu0 %v1169
    %1182 = vmatprep.subr.mxu0 0.0
    %1183 = vmatpush1.msra.mxu0 0.0
    %1184 = vmatprep.subr.mxu0 0.0
    %1185 = vmatpush1.msra.mxu0 0.0
    %1186 = vmatprep.subr.mxu0 0.0
    %1187 = vmatpush1.msra.mxu0 0.0
    %1188 = vmatprep.subr.mxu0 0.0
    %1189 = vmatpush1.msra.mxu0 0.0
    %1190 = vmatprep.subr.mxu0 0.0
    %1191 = vmatpush1.msra.mxu0 0.0
    %1192 = vmatprep.subr.mxu0 0.0
    %1193 = vmatpush1.msra.mxu0 0.0
    %1194 = vmatprep.subr.mxu0 0.0
    %1195 = vmatpush1.msra.mxu0 0.0
    %1196 = vmatprep.subr.mxu0 0.0
    %1197 = vmatpush1.msra.mxu0 0.0
    %1198 = vmatprep.subr.mxu0 0.0
    %1199 = vmatpush1.msra.mxu0 0.0
    %1200 = vmatprep.subr.mxu0 0.0
    %1201 = vmatpush1.msra.mxu0 0.0
    %1202 = vmatprep.subr.mxu0 0.0
    %1203 = vmatpush1.msra.mxu0 0.0
    %1204 = vmatprep.subr.mxu0 0.0
    %1205 = vmatpush1.msra.mxu0 0.0
    %1206 = vmatprep.subr.mxu0 0.0
    %1207 = vmatpush1.msra.mxu0 0.0
    %1208 = vmatprep.subr.mxu0 0.0
    %1209 = vmatpush1.msra.mxu0 0.0
    %1210 = vmatprep.subr.mxu0 0.0
    %1211 = vmatpush1.msra.mxu0 0.0
    %1212 = vmatprep.subr.mxu0 0.0
    %1213 = vmatpush1.msra.mxu0 0.0
    %1214 = vmatprep.subr.mxu0 0.0
    %1215 = vmatpush1.msra.mxu0 0.0
    %1216 = vmatprep.subr.mxu0 0.0
    %1217 = vmatpush1.msra.mxu0 0.0
    %1218 = vmatprep.subr.mxu0 0.0
    %1219 = vmatpush1.msra.mxu0 0.0
    %1220 = vmatprep.subr.mxu0 0.0
    %1221 = vmatpush1.msra.mxu0 0.0
    %1222 = vmatprep.subr.mxu0 0.0
    %1223 = vmatpush1.msra.mxu0 0.0
    %1224 = vmatprep.subr.mxu0 0.0
    %1225 = vmatpush1.msra.mxu0 0.0
    %1226 = vmatprep.subr.mxu0 0.0
    %1227 = vmatpush1.msra.mxu0 0.0
    %1228 = vmatprep.subr.mxu0 0.0
    %1229 = vmatpush1.msra.mxu0 0.0
    %1230 = vmatprep.subr.mxu0 0.0
    %1231 = vmatpush1.msra.mxu0 0.0
    %1232 = vmatprep.subr.mxu0 0.0
    %1233 = vmatpush1.msra.mxu0 0.0
    %1234 = vmatprep.subr.mxu0 0.0
    %1235 = vmatpush1.msra.mxu0 0.0
    %1236 = vmatprep.subr.mxu0 0.0
    %1237 = vmatpush1.msra.mxu0 0.0
    %1238 = vmatprep.subr.mxu0 0.0
    %1239 = vmatpush1.msra.mxu0 0.0
    %1240 = vmatprep.mubr.f32.mxu0 0.0
    %1241 = vmatmul.mubr.f32.gmra.mrb[0].mxu0 %v363
    %v1242 = vpop.f32.mrb[0].mxu0
    %v1243 = vadd.f32 0.0, %v1242
    %v1244 = vpop.f32.mrb[0].mxu0
    %1245 = vmatprep.mubr.f32.mxu0 0.0
    %1246 = vmatmul.mubr.f32.gmra.mrb[0].mxu0 %v366
    %v1247 = vpop.f32.mrb[0].mxu0
    %v1248 = vadd.f32 0.0, %v1247
    %v1249 = vpop.f32.mrb[0].mxu0
    %1250 = vmatprep.mubr.f32.mxu0 0.0
    %1251 = vmatmul.mubr.f32.gmra.mrb[0].mxu0 %v369
    %v1252 = vpop.f32.mrb[0].mxu0
    %v1253 = vadd.f32 0.0, %v1252
    %v1254 = vpop.f32.mrb[0].mxu0
    %1255 = vdwg.mxu0
    %1256 = vmatprep.subr.mxu0 0.0
    %1257 = vmatpush1.msra.mxu0 %v1173
    %1258 = vmatprep.subr.mxu0 0.0
    %1259 = vmatpush1.msra.mxu0 %v1174
    %1260 = vmatprep.subr.mxu0 0.0
    %1261 = vmatpush1.msra.mxu0 %v1175
    %1262 = vmatprep.subr.mxu0 0.0
    %1263 = vmatpush1.msra.mxu0 0.0
    %1264 = vmatprep.subr.mxu0 0.0
    %1265 = vmatpush1.msra.mxu0 0.0
    %1266 = vmatprep.subr.mxu0 0.0
    %1267 = vmatpush1.msra.mxu0 0.0
    %1268 = vmatprep.subr.mxu0 0.0
    %1269 = vmatpush1.msra.mxu0 0.0
    %1270 = vmatprep.subr.mxu0 0.0
    %1271 = vmatpush1.msra.mxu0 0.0
    %1272 = vmatprep.subr.mxu0 0.0
    %1273 = vmatpush1.msra.mxu0 0.0
    %1274 = vmatprep.subr.mxu0 0.0
    %1275 = vmatpush1.msra.mxu0 0.0
    %1276 = vmatprep.subr.mxu0 0.0
    %1277 = vmatpush1.msra.mxu0 0.0
    %1278 = vmatprep.subr.mxu0 0.0
    %1279 = vmatpush1.msra.mxu0 0.0
    %1280 = vmatprep.subr.mxu0 0.0
    %1281 = vmatpush1.msra.mxu0 0.0
    %1282 = vmatprep.subr.mxu0 0.0
    %1283 = vmatpush1.msra.mxu0 0.0
    %1284 = vmatprep.subr.mxu0 0.0
    %1285 = vmatpush1.msra.mxu0 0.0
    %1286 = vmatprep.subr.mxu0 0.0
    %1287 = vmatpush1.msra.mxu0 0.0
    %1288 = vmatprep.subr.mxu0 0.0
    %1289 = vmatpush1.msra.mxu0 0.0
    %1290 = vmatprep.subr.mxu0 0.0
    %1291 = vmatpush1.msra.mxu0 0.0
    %1292 = vmatprep.subr.mxu0 0.0
    %1293 = vmatpush1.msra.mxu0 0.0
    %1294 = vmatprep.subr.mxu0 0.0
    %1295 = vmatpush1.msra.mxu0 0.0
    %1296 = vmatprep.subr.mxu0 0.0
    %1297 = vmatpush1.msra.mxu0 0.0
    %1298 = vmatprep.subr.mxu0 0.0
    %1299 = vmatpush1.msra.mxu0 0.0
    %1300 = vmatprep.subr.mxu0 0.0
    %1301 = vmatpush1.msra.mxu0 0.0
    %1302 = vmatprep.subr.mxu0 0.0
    %1303 = vmatpush1.msra.mxu0 0.0
    %1304 = vmatprep.subr.mxu0 0.0
    %1305 = vmatpush1.msra.mxu0 0.0
    %1306 = vmatprep.subr.mxu0 0.0
    %1307 = vmatpush1.msra.mxu0 0.0
    %1308 = vmatprep.subr.mxu0 0.0
    %1309 = vmatpush1.msra.mxu0 0.0
    %1310 = vmatprep.subr.mxu0 0.0
    %1311 = vmatpush1.msra.mxu0 0.0
    %1312 = vmatprep.subr.mxu0 0.0
    %1313 = vmatpush1.msra.mxu0 0.0
    %1314 = vmatprep.subr.mxu0 0.0
    %1315 = vmatpush1.msra.mxu0 0.0
    %1316 = vmatprep.subr.mxu0 0.0
    %1317 = vmatpush1.msra.mxu0 0.0
    %1318 = vmatprep.subr.mxu0 0.0
    %1319 = vmatpush1.msra.mxu0 0.0
    %1320 = vmatprep.mubr.f32.mxu0 0.0
    %1321 = vmatmul.mubr.f32.gmra.mrb[0].mxu0 %v452
    %v1322 = vpop.f32.mrb[0].mxu0
    %v1323 = vadd.f32 0.0, %v1322
    %v1324 = vpop.f32.mrb[0].mxu0
    %1325 = vmatprep.mubr.f32.mxu0 0.0
    %1326 = vmatmul.mubr.f32.gmra.mrb[0].mxu0 %v455
    %v1327 = vpop.f32.mrb[0].mxu0
    %v1328 = vadd.f32 0.0, %v1327
    %v1329 = vpop.f32.mrb[0].mxu0
    %1330 = vmatprep.mubr.f32.mxu0 0.0
    %1331 = vmatmul.mubr.f32.gmra.mrb[0].mxu0 %v458
    %v1332 = vpop.f32.mrb[0].mxu0
    %v1333 = vadd.f32 0.0, %v1332
    %v1334 = vpop.f32.mrb[0].mxu0
    %1335 = vdwg.mxu0
    %v1336 = vadd.f32 %v1167, %v1173
    %v1337 = vadd.f32 %v1168, %v1174
    %v1338 = vadd.f32 %v1169, %v1175
    %1339 = vmatprep.subr.mxu0 0.0
    %1340 = vmatpush1.msra.mxu0 %v1336
    %1341 = vmatprep.subr.mxu0 0.0
    %1342 = vmatpush1.msra.mxu0 %v1337
    %1343 = vmatprep.subr.mxu0 0.0
    %1344 = vmatpush1.msra.mxu0 %v1338
    %1345 = vmatprep.subr.mxu0 0.0
    %1346 = vmatpush1.msra.mxu0 0.0
    %1347 = vmatprep.subr.mxu0 0.0
    %1348 = vmatpush1.msra.mxu0 0.0
    %1349 = vmatprep.subr.mxu0 0.0
    %1350 = vmatpush1.msra.mxu0 0.0
    %1351 = vmatprep.subr.mxu0 0.0
    %1352 = vmatpush1.msra.mxu0 0.0
    %1353 = vmatprep.subr.mxu0 0.0
    %1354 = vmatpush1.msra.mxu0 0.0
    %1355 = vmatprep.subr.mxu0 0.0
    %1356 = vmatpush1.msra.mxu0 0.0
    %1357 = vmatprep.subr.mxu0 0.0
    %1358 = vmatpush1.msra.mxu0 0.0
    %1359 = vmatprep.subr.mxu0 0.0
    %1360 = vmatpush1.msra.mxu0 0.0
    %1361 = vmatprep.subr.mxu0 0.0
    %1362 = vmatpush1.msra.mxu0 0.0
    %1363 = vmatprep.subr.mxu0 0.0
    %1364 = vmatpush1.msra.mxu0 0.0
    %1365 = vmatprep.subr.mxu0 0.0
    %1366 = vmatpush1.msra.mxu0 0.0
    %1367 = vmatprep.subr.mxu0 0.0
    %1368 = vmatpush1.msra.mxu0 0.0
    %1369 = vmatprep.subr.mxu0 0.0
    %1370 = vmatpush1.msra.mxu0 0.0
    %1371 = vmatprep.subr.mxu0 0.0
    %1372 = vmatpush1.msra.mxu0 0.0
    %1373 = vmatprep.subr.mxu0 0.0
    %1374 = vmatpush1.msra.mxu0 0.0
    %1375 = vmatprep.subr.mxu0 0.0
    %1376 = vmatpush1.msra.mxu0 0.0
    %1377 = vmatprep.subr.mxu0 0.0
    %1378 = vmatpush1.msra.mxu0 0.0
    %1379 = vmatprep.subr.mxu0 0.0
    %1380 = vmatpush1.msra.mxu0 0.0
    %1381 = vmatprep.subr.mxu0 0.0
    %1382 = vmatpush1.msra.mxu0 0.0
    %1383 = vmatprep.subr.mxu0 0.0
    %1384 = vmatpush1.msra.mxu0 0.0
    %1385 = vmatprep.subr.mxu0 0.0
    %1386 = vmatpush1.msra.mxu0 0.0
    %1387 = vmatprep.subr.mxu0 0.0
    %1388 = vmatpush1.msra.mxu0 0.0
    %1389 = vmatprep.subr.mxu0 0.0
    %1390 = vmatpush1.msra.mxu0 0.0
    %1391 = vmatprep.subr.mxu0 0.0
    %1392 = vmatpush1.msra.mxu0 0.0
    %1393 = vmatprep.subr.mxu0 0.0
    %1394 = vmatpush1.msra.mxu0 0.0
    %1395 = vmatprep.subr.mxu0 0.0
    %1396 = vmatpush1.msra.mxu0 0.0
    %1397 = vmatprep.subr.mxu0 0.0
    %1398 = vmatpush1.msra.mxu0 0.0
    %1399 = vmatprep.subr.mxu0 0.0
    %1400 = vmatpush1.msra.mxu0 0.0
    %1401 = vmatprep.subr.mxu0 0.0
    %1402 = vmatpush1.msra.mxu0 0.0
    %1403 = vmatprep.mubr.f32.mxu0 0.0
    %1404 = vmatmul.mubr.f32.gmra.mrb[0].mxu0 %v544
    %v1405 = vpop.f32.mrb[0].mxu0
    %v1406 = vadd.f32 0.0, %v1405
    %v1407 = vpop.f32.mrb[0].mxu0
    %1408 = vmatprep.mubr.f32.mxu0 0.0
    %1409 = vmatmul.mubr.f32.gmra.mrb[0].mxu0 %v547
    %v1410 = vpop.f32.mrb[0].mxu0
    %v1411 = vadd.f32 0.0, %v1410
    %v1412 = vpop.f32.mrb[0].mxu0
    %1413 = vmatprep.mubr.f32.mxu0 0.0
    %1414 = vmatmul.mubr.f32.gmra.mrb[0].mxu0 %v550
    %v1415 = vpop.f32.mrb[0].mxu0
    %v1416 = vadd.f32 0.0, %v1415
    %v1417 = vpop.f32.mrb[0].mxu0
    %1418 = vdwg.mxu0
    %v1419 = vsub.f32 %v1243, %v1323
    %v1420 = vsub.f32 %v1248, %v1328
    %v1421 = vsub.f32 %v1253, %v1333
    %v1422 = vsub.f32 %v1406, %v1243
    %v1423 = vsub.f32 %v1411, %v1248
    %v1424 = vsub.f32 %v1416, %v1253
    %v1425 = vsub.f32 %v1422, %v1323
    %v1426 = vsub.f32 %v1423, %v1328
    %v1427 = vsub.f32 %v1424, %v1333
    %v1428 = vadd.f32 %v1419, %v1167
    %v1429 = vadd.f32 %v1420, %v1168
    %v1430 = vadd.f32 %v1421, %v1169
    %v1431 = vadd.f32 %v1425, %v1173
    %v1432 = vadd.f32 %v1426, %v1174
    %v1433 = vadd.f32 %v1427, %v1175
    %1434 = vmatprep.subr.mxu0 0.0
    %1435 = vmatpush1.msra.mxu0 %v1428
    %1436 = vmatprep.subr.mxu0 0.0
    %1437 = vmatpush1.msra.mxu0 %v1429
    %1438 = vmatprep.subr.mxu0 0.0
    %1439 = vmatpush1.msra.mxu0 %v1430
    %1440 = vmatprep.subr.mxu0 0.0
    %1441 = vmatpush1.msra.mxu0 0.0
    %1442 = vmatprep.subr.mxu0 0.0
    %1443 = vmatpush1.msra.mxu0 0.0
    %1444 = vmatprep.subr.mxu0 0.0
    %1445 = vmatpush1.msra.mxu0 0.0
    %1446 = vmatprep.subr.mxu0 0.0
    %1447 = vmatpush1.msra.mxu0 0.0
    %1448 = vmatprep.subr.mxu0 0.0
    %1449 = vmatpush1.msra.mxu0 0.0
    %1450 = vmatprep.subr.mxu0 0.0
    %1451 = vmatpush1.msra.mxu0 0.0
    %1452 = vmatprep.subr.mxu0 0.0
    %1453 = vmatpush1.msra.mxu0 0.0
    %1454 = vmatprep.subr.mxu0 0.0
    %1455 = vmatpush1.msra.mxu0 0.0
    %1456 = vmatprep.subr.mxu0 0.0
    %1457 = vmatpush1.msra.mxu0 0.0
    %1458 = vmatprep.subr.mxu0 0.0
    %1459 = vmatpush1.msra.mxu0 0.0
    %1460 = vmatprep.subr.mxu0 0.0
    %1461 = vmatpush1.msra.mxu0 0.0
    %1462 = vmatprep.subr.mxu0 0.0
    %1463 = vmatpush1.msra.mxu0 0.0
    %1464 = vmatprep.subr.mxu0 0.0
    %1465 = vmatpush1.msra.mxu0 0.0
    %1466 = vmatprep.subr.mxu0 0.0
    %1467 = vmatpush1.msra.mxu0 0.0
    %1468 = vmatprep.subr.mxu0 0.0
    %1469 = vmatpush1.msra.mxu0 0.0
    %1470 = vmatprep.subr.mxu0 0.0
    %1471 = vmatpush1.msra.mxu0 0.0
    %1472 = vmatprep.subr.mxu0 0.0
    %1473 = vmatpush1.msra.mxu0 0.0
    %1474 = vmatprep.subr.mxu0 0.0
    %1475 = vmatpush1.msra.mxu0 0.0
    %1476 = vmatprep.subr.mxu0 0.0
    %1477 = vmatpush1.msra.mxu0 0.0
    %1478 = vmatprep.subr.mxu0 0.0
    %1479 = vmatpush1.msra.mxu0 0.0
    %1480 = vmatprep.subr.mxu0 0.0
    %1481 = vmatpush1.msra.mxu0 0.0
    %1482 = vmatprep.subr.mxu0 0.0
    %1483 = vmatpush1.msra.mxu0 0.0
    %1484 = vmatprep.subr.mxu0 0.0
    %1485 = vmatpush1.msra.mxu0 0.0
    %1486 = vmatprep.subr.mxu0 0.0
    %1487 = vmatpush1.msra.mxu0 0.0
    %1488 = vmatprep.subr.mxu0 0.0
    %1489 = vmatpush1.msra.mxu0 0.0
    %1490 = vmatprep.subr.mxu0 0.0
    %1491 = vmatpush1.msra.mxu0 0.0
    %1492 = vmatprep.subr.mxu0 0.0
    %1493 = vmatpush1.msra.mxu0 0.0
    %1494 = vmatprep.subr.mxu0 0.0
    %1495 = vmatpush1.msra.mxu0 0.0
    %1496 = vmatprep.subr.mxu0 0.0
    %1497 = vmatpush1.msra.mxu0 0.0
    %1498 = vmatprep.mubr.f32.mxu0 0.0
    %1499 = vmatmul.mubr.f32.gmra.mrb[0].mxu0 %v363
    %v1500 = vpop.f32.mrb[0].mxu0
    %v1501 = vadd.f32 0.0, %v1500
    %v1502 = vpop.f32.mrb[0].mxu0
    %1503 = vmatprep.mubr.f32.mxu0 0.0
    %1504 = vmatmul.mubr.f32.gmra.mrb[0].mxu0 %v366
    %v1505 = vpop.f32.mrb[0].mxu0
    %v1506 = vadd.f32 0.0, %v1505
    %v1507 = vpop.f32.mrb[0].mxu0
    %1508 = vmatprep.mubr.f32.mxu0 0.0
    %1509 = vmatmul.mubr.f32.gmra.mrb[0].mxu0 %v369
    %v1510 = vpop.f32.mrb[0].mxu0
    %v1511 = vadd.f32 0.0, %v1510
    %v1512 = vpop.f32.mrb[0].mxu0
    %1513 = vdwg.mxu0
    %1514 = vmatprep.subr.mxu0 0.0
    %1515 = vmatpush1.msra.mxu0 %v1431
    %1516 = vmatprep.subr.mxu0 0.0
    %1517 = vmatpush1.msra.mxu0 %v1432
    %1518 = vmatprep.subr.mxu0 0.0
    %1519 = vmatpush1.msra.mxu0 %v1433
    %1520 = vmatprep.subr.mxu0 0.0
    %1521 = vmatpush1.msra.mxu0 0.0
    %1522 = vmatprep.subr.mxu0 0.0
    %1523 = vmatpush1.msra.mxu0 0.0
    %1524 = vmatprep.subr.mxu0 0.0
    %1525 = vmatpush1.msra.mxu0 0.0
    %1526 = vmatprep.subr.mxu0 0.0
    %1527 = vmatpush1.msra.mxu0 0.0
    %1528 = vmatprep.subr.mxu0 0.0
    %1529 = vmatpush1.msra.mxu0 0.0
    %1530 = vmatprep.subr.mxu0 0.0
    %1531 = vmatpush1.msra.mxu0 0.0
    %1532 = vmatprep.subr.mxu0 0.0
    %1533 = vmatpush1.msra.mxu0 0.0
    %1534 = vmatprep.subr.mxu0 0.0
    %1535 = vmatpush1.msra.mxu0 0.0
    %1536 = vmatprep.subr.mxu0 0.0
    %1537 = vmatpush1.msra.mxu0 0.0
    %1538 = vmatprep.subr.mxu0 0.0
    %1539 = vmatpush1.msra.mxu0 0.0
    %1540 = vmatprep.subr.mxu0 0.0
    %1541 = vmatpush1.msra.mxu0 0.0
    %1542 = vmatprep.subr.mxu0 0.0
    %1543 = vmatpush1.msra.mxu0 0.0
    %1544 = vmatprep.subr.mxu0 0.0
    %1545 = vmatpush1.msra.mxu0 0.0
    %1546 = vmatprep.subr.mxu0 0.0
    %1547 = vmatpush1.msra.mxu0 0.0
    %1548 = vmatprep.subr.mxu0 0.0
    %1549 = vmatpush1.msra.mxu0 0.0
    %1550 = vmatprep.subr.mxu0 0.0
    %1551 = vmatpush1.msra.mxu0 0.0
    %1552 = vmatprep.subr.mxu0 0.0
    %1553 = vmatpush1.msra.mxu0 0.0
    %1554 = vmatprep.subr.mxu0 0.0
    %1555 = vmatpush1.msra.mxu0 0.0
    %1556 = vmatprep.subr.mxu0 0.0
    %1557 = vmatpush1.msra.mxu0 0.0
    %1558 = vmatprep.subr.mxu0 0.0
    %1559 = vmatpush1.msra.mxu0 0.0
    %1560 = vmatprep.subr.mxu0 0.0
    %1561 = vmatpush1.msra.mxu0 0.0
    %1562 = vmatprep.subr.mxu0 0.0
    %1563 = vmatpush1.msra.mxu0 0.0
    %1564 = vmatprep.subr.mxu0 0.0
    %1565 = vmatpush1.msra.mxu0 0.0
    %1566 = vmatprep.subr.mxu0 0.0
    %1567 = vmatpush1.msra.mxu0 0.0
    %1568 = vmatprep.subr.mxu0 0.0
    %1569 = vmatpush1.msra.mxu0 0.0
    %1570 = vmatprep.subr.mxu0 0.0
    %1571 = vmatpush1.msra.mxu0 0.0
    %1572 = vmatprep.subr.mxu0 0.0
    %1573 = vmatpush1.msra.mxu0 0.0
    %1574 = vmatprep.subr.mxu0 0.0
    %1575 = vmatpush1.msra.mxu0 0.0
    %1576 = vmatprep.subr.mxu0 0.0
    %1577 = vmatpush1.msra.mxu0 0.0
    %1578 = vmatprep.mubr.f32.mxu0 0.0
    %1579 = vmatmul.mubr.f32.gmra.mrb[0].mxu0 %v452
    %v1580 = vpop.f32.mrb[0].mxu0
    %v1581 = vadd.f32 0.0, %v1580
    %v1582 = vpop.f32.mrb[0].mxu0
    %1583 = vmatprep.mubr.f32.mxu0 0.0
    %1584 = vmatmul.mubr.f32.gmra.mrb[0].mxu0 %v455
    %v1585 = vpop.f32.mrb[0].mxu0
    %v1586 = vadd.f32 0.0, %v1585
    %v1587 = vpop.f32.mrb[0].mxu0
    %1588 = vmatprep.mubr.f32.mxu0 0.0
    %1589 = vmatmul.mubr.f32.gmra.mrb[0].mxu0 %v458
    %v1590 = vpop.f32.mrb[0].mxu0
    %v1591 = vadd.f32 0.0, %v1590
    %v1592 = vpop.f32.mrb[0].mxu0
    %1593 = vdwg.mxu0
    %v1594 = vadd.f32 %v1428, %v1431
    %v1595 = vadd.f32 %v1429, %v1432
    %v1596 = vadd.f32 %v1430, %v1433
    %1597 = vmatprep.subr.mxu0 0.0
    %1598 = vmatpush1.msra.mxu0 %v1594
    %1599 = vmatprep.subr.mxu0 0.0
    %1600 = vmatpush1.msra.mxu0 %v1595
    %1601 = vmatprep.subr.mxu0 0.0
    %1602 = vmatpush1.msra.mxu0 %v1596
    %1603 = vmatprep.subr.mxu0 0.0
    %1604 = vmatpush1.msra.mxu0 0.0
    %1605 = vmatprep.subr.mxu0 0.0
    %1606 = vmatpush1.msra.mxu0 0.0
    %1607 = vmatprep.subr.mxu0 0.0
    %1608 = vmatpush1.msra.mxu0 0.0
    %1609 = vmatprep.subr.mxu0 0.0
    %1610 = vmatpush1.msra.mxu0 0.0
    %1611 = vmatprep.subr.mxu0 0.0
    %1612 = vmatpush1.msra.mxu0 0.0
    %1613 = vmatprep.subr.mxu0 0.0
    %1614 = vmatpush1.msra.mxu0 0.0
    %1615 = vmatprep.subr.mxu0 0.0
    %1616 = vmatpush1.msra.mxu0 0.0
    %1617 = vmatprep.subr.mxu0 0.0
    %1618 = vmatpush1.msra.mxu0 0.0
    %1619 = vmatprep.subr.mxu0 0.0
    %1620 = vmatpush1.msra.mxu0 0.0
    %1621 = vmatprep.subr.mxu0 0.0
    %1622 = vmatpush1.msra.mxu0 0.0
    %1623 = vmatprep.subr.mxu0 0.0
    %1624 = vmatpush1.msra.mxu0 0.0
    %1625 = vmatprep.subr.mxu0 0.0
    %1626 = vmatpush1.msra.mxu0 0.0
    %1627 = vmatprep.subr.mxu0 0.0
    %1628 = vmatpush1.msra.mxu0 0.0
    %1629 = vmatprep.subr.mxu0 0.0
    %1630 = vmatpush1.msra.mxu0 0.0
    %1631 = vmatprep.subr.mxu0 0.0
    %1632 = vmatpush1.msra.mxu0 0.0
    %1633 = vmatprep.subr.mxu0 0.0
    %1634 = vmatpush1.msra.mxu0 0.0
    %1635 = vmatprep.subr.mxu0 0.0
    %1636 = vmatpush1.msra.mxu0 0.0
    %1637 = vmatprep.subr.mxu0 0.0
    %1638 = vmatpush1.msra.mxu0 0.0
    %1639 = vmatprep.subr.mxu0 0.0
    %1640 = vmatpush1.msra.mxu0 0.0
    %1641 = vmatprep.subr.mxu0 0.0
    %1642 = vmatpush1.msra.mxu0 0.0
    %1643 = vmatprep.subr.mxu0 0.0
    %1644 = vmatpush1.msra.mxu0 0.0
    %1645 = vmatprep.subr.mxu0 0.0
    %1646 = vmatpush1.msra.mxu0 0.0
    %1647 = vmatprep.subr.mxu0 0.0
    %1648 = vmatpush1.msra.mxu0 0.0
    %1649 = vmatprep.subr.mxu0 0.0
    %1650 = vmatpush1.msra.mxu0 0.0
    %1651 = vmatprep.subr.mxu0 0.0
    %1652 = vmatpush1.msra.mxu0 0.0
    %1653 = vmatprep.subr.mxu0 0.0
    %1654 = vmatpush1.msra.mxu0 0.0
    %1655 = vmatprep.subr.mxu0 0.0
    %1656 = vmatpush1.msra.mxu0 0.0
    %1657 = vmatprep.subr.mxu0 0.0
    %1658 = vmatpush1.msra.mxu0 0.0
    %1659 = vmatprep.subr.mxu0 0.0
    %1660 = vmatpush1.msra.mxu0 0.0
    %1661 = vmatprep.mubr.f32.mxu0 0.0
    %1662 = vmatmul.mubr.f32.gmra.mrb[0].mxu0 %v544
    %v1663 = vpop.f32.mrb[0].mxu0
    %v1664 = vadd.f32 0.0, %v1663
    %v1665 = vpop.f32.mrb[0].mxu0
    %1666 = vmatprep.mubr.f32.mxu0 0.0
    %1667 = vmatmul.mubr.f32.gmra.mrb[0].mxu0 %v547
    %v1668 = vpop.f32.mrb[0].mxu0
    %v1669 = vadd.f32 0.0, %v1668
    %v1670 = vpop.f32.mrb[0].mxu0
    %1671 = vmatprep.mubr.f32.mxu0 0.0
    %1672 = vmatmul.mubr.f32.gmra.mrb[0].mxu0 %v550
    %v1673 = vpop.f32.mrb[0].mxu0
    %v1674 = vadd.f32 0.0, %v1673
    %v1675 = vpop.f32.mrb[0].mxu0
    %1676 = vdwg.mxu0
    %v1677 = vsub.f32 %v1501, %v1581
    %v1678 = vsub.f32 %v1506, %v1586
    %v1679 = vsub.f32 %v1511, %v1591
    %v1680 = vsub.f32 %v1664, %v1501
    %v1681 = vsub.f32 %v1669, %v1506
    %v1682 = vsub.f32 %v1674, %v1511
    %v1683 = vsub.f32 %v1680, %v1581
    %v1684 = vsub.f32 %v1681, %v1586
    %v1685 = vsub.f32 %v1682, %v1591
    %v1686 = vadd.f32 %v1677, %v1167
    %v1687 = vadd.f32 %v1678, %v1168
    %v1688 = vadd.f32 %v1679, %v1169
    %v1689 = vadd.f32 %v1683, %v1173
    %v1690 = vadd.f32 %v1684, %v1174
    %v1691 = vadd.f32 %v1685, %v1175
    %s1692 = sld [smem:[#allocation3 + $0x1]]
    %v1693 = vstv %s1692
    %v1694 = vmul.f32 %v1693, %v1686
    %v1695 = vmul.f32 %v1693, %v1687
    %v1696 = vmul.f32 %v1693, %v1688
    %s1697 = sld [smem:[#allocation6 + $0x1]]
    %v1698 = vstv %s1697
    %v1699 = vmul.f32 %v1698, %v1689
    %v1700 = vmul.f32 %v1698, %v1690
    %v1701 = vmul.f32 %v1698, %v1691
    %v1702 = vsub.f32 %v1694, %v1699
    %v1703 = vsub.f32 %v1695, %v1700
    %v1704 = vsub.f32 %v1696, %v1701
    %v1705 = vmul.f32 %v1702, 2.0
    %v1706 = vmul.f32 %v1703, 2.0
    %v1707 = vmul.f32 %v1704, 2.0
    %v1708 = vadd.f32 %v921, %v1705
    %v1709 = vadd.f32 %v922, %v1706
    %v1710 = vadd.f32 %v923, %v1707
    %1711 = vst [vmem:[#allocation8] sm:$0xff] %v1708
    %1712 = vst [vmem:[#allocation8 + $0x8] sm:$0xff] %v1709
    %1713 = vst [vmem:[#allocation8 + $0x10] sm:$0xff] %v1710
    // Predicated region
    $region42: #{cayley_conv_pallas.1} parent=1 // pred_check
      _
    $region43: #{cayley_conv_pallas.1} parent=1 // pred_check_branch
      %1715 = sbr.rel (0) target = $region45
    $region44: #{cayley_conv_pallas.1} parent=1 // pred_region
      %s1717 = ssub.s32 384, 384
      %1718 = vsyncadd [#allocation4], %s1717
      %s1719 = sshll.u32 [#allocation8], 4
      %s1720 = int_to_ptr.vmem [resolvable:$true] %s1719
      %1725 = dma.vmem_to_hbm [thread:$0]  %s1720, 384, %s8, [#allocation4], 128, 128, 8
    $region45: #{cayley_conv_pallas.1} parent=1 // pred_fallthru
      _
    // Predicated region
    $region46: #{cayley_conv_pallas.1} parent=1 // pred_check
      _
    $region47: #{cayley_conv_pallas.1} parent=1 // pred_check_branch
      %1727 = sbr.rel (0) target = $region49
    $region48: #{cayley_conv_pallas.1} parent=1 // pred_region
      %1728 = dma.done [#allocation4], 384
    $region49: #{cayley_conv_pallas.1} parent=1 // pred_fallthru
      _
    %1729 = vsyncpa [#allocation4], 1
    %1730 = vsyncpa [#allocation5], 1
    %1731 = vsyncpa [#allocation7], 1

</llo_original>
